<compile_context>
chip_gen: v7x
topology: tpu7x:2x2x1
jax: 0.10.0
libtpu: 0.0.40
codegen_flags: <defaults>
</compile_context>

<pallas_src>
import functools

import numpy as np
import jax
import jax.numpy as jnp
from jax import lax
from jax.experimental import pallas as pl
from jax.experimental.pallas import tpu as pltpu


# Whole-T resident block up to this many timesteps (1.5 MB per (3, T) f32
# slab; in+out double-buffered stays far under the 32 MiB scoped-VMEM default
# on v5e/v6e and under v7x's 64 MiB part).  Longer sequences stream tiles of
# the same size through the two-phase pipeline.
_SINGLE_BLOCK_T = 128 * 1024
_TILE_T = 128 * 1024
_NEWTON_ITERS = 24


# ------------------------------ fused kernel -------------------------------

def _fused_kernel(q_ref, ax_ref, x_ref, o_ref, stat_ref, ref_ref, bas_ref,
                  *, t_total, tk, mask_tail):
    """Two-phase fused kernel.

    phase 0 (p == 0): accumulate refPos-centered second-order statistics of
        the positions; on the last tile, compute the PCA-z direction
        (Newton on the characteristic cubic + cross-product null-space
        vector), orient it with the quaternion forward axis, build the new
        basis and fold the translation into it (stored in bas_ref).
    phase 1 (p == 1): o = B @ x - (B @ refPos) as broadcast FMAs (VPU only).
    """
    p = pl.program_id(0)          # 0: stats pass, 1: transform pass
    k = pl.program_id(1)          # tile index along T
    nk = pl.num_programs(1)

    # ---------------------- phase 0: statistics ----------------------------
    @pl.when(p == 0)
    def _stats_phase():
        @pl.when(k == 0)
        def _init():
            stat_ref[...] = jnp.zeros_like(stat_ref)
            ref_ref[...] = x_ref[:, 0:1]          # refPos column (3, 1)

        xc = x_ref[...] - ref_ref[...]            # (3, tk), refPos-centered
        if mask_tail:
            # Tail of the last (partial) tile: zero contributions instead of
            # padding/copying the input in HBM.
            lane = lax.broadcasted_iota(jnp.int32, (3, tk), 1)
            valid = t_total - k * tk
            xc = jnp.where(lane < valid, xc, 0.0)

        x0 = xc[0:1, :]
        x1 = xc[1:2, :]
        x2 = xc[2:3, :]
        sq = jnp.sum(xc * xc, axis=1, keepdims=True)       # (3, 1)
        sm = jnp.sum(xc, axis=1, keepdims=True)            # (3, 1)
        s01 = jnp.sum(x0 * x1, axis=1, keepdims=True)      # (1, 1)
        s12 = jnp.sum(x1 * x2, axis=1, keepdims=True)
        s02 = jnp.sum(x0 * x2, axis=1, keepdims=True)
        stat_ref[:, 0:1] += sq
        stat_ref[:, 1:2] += sm
        stat_ref[0:1, 2:3] += s01
        stat_ref[1:2, 2:3] += s12
        stat_ref[2:3, 2:3] += s02

        # ------------- finalize: eigenvector + basis (once) ----------------
        @pl.when(k == nk - 1)
        def _finalize_basis():
            s = stat_ref[...]                               # (3, 3)
            inv_n = 1.0 / float(t_total)
            sq_ = s[:, 0:1]
            m_ = s[:, 1:2]
            cr_ = s[:, 2:3]
            m0, m1, m2 = m_[0:1], m_[1:2], m_[2:3]
            # (T-1) * covariance; eigenvectors are scale-invariant so we skip
            # the 1/(T-1) division entirely.
            c00 = sq_[0:1] - m0 * m0 * inv_n
            c11 = sq_[1:2] - m1 * m1 * inv_n
            c22 = sq_[2:3] - m2 * m2 * inv_n
            c01 = cr_[0:1] - m0 * m1 * inv_n
            c12 = cr_[1:2] - m1 * m2 * inv_n
            c02 = cr_[2:3] - m0 * m2 * inv_n
            # Normalize by the largest magnitude entry for f32 robustness
            # (does not change eigenvectors).
            scale = jnp.maximum(
                jnp.maximum(jnp.maximum(jnp.abs(c00), jnp.abs(c11)),
                            jnp.maximum(jnp.abs(c22), jnp.abs(c01))),
                jnp.maximum(jnp.abs(c12), jnp.abs(c02)))
            inv_s = 1.0 / jnp.maximum(scale, 1e-30)
            c00, c11, c22 = c00 * inv_s, c11 * inv_s, c22 * inv_s
            c01, c12, c02 = c01 * inv_s, c12 * inv_s, c02 * inv_s

            # Characteristic cubic p(l) = l^3 - tr*l^2 + p1*l - det.
            tr = c00 + c11 + c22
            p1 = (c00 * c11 + c00 * c22 + c11 * c22
                  - c01 * c01 - c02 * c02 - c12 * c12)
            det = (c00 * (c11 * c22 - c12 * c12)
                   - c01 * (c01 * c22 - c12 * c02)
                   + c02 * (c01 * c12 - c11 * c02))
            # Gershgorin upper bound; Newton from above converges
            # monotonically to the largest eigenvalue (only *,/,+ needed).
            g0 = c00 + jnp.abs(c01) + jnp.abs(c02)
            g1 = c11 + jnp.abs(c01) + jnp.abs(c12)
            g2 = c22 + jnp.abs(c02) + jnp.abs(c12)
            lam = jnp.maximum(jnp.maximum(g0, g1), g2)
            for _ in range(_NEWTON_ITERS):
                pv = ((lam - tr) * lam + p1) * lam - det
                dp = (3.0 * lam - 2.0 * tr) * lam + p1
                lam = lam - jnp.where(jnp.abs(dp) > 1e-30, pv / dp, 0.0)

            # Top eigenvector = best-conditioned cross product of rows of
            # (C - lam*I).
            a0, b0, d0 = c00 - lam, c01, c02
            a1, b1, d1 = c01, c11 - lam, c12
            a2, b2, d2 = c02, c12, c22 - lam
            v0x, v0y, v0z = b0 * d1 - d0 * b1, d0 * a1 - a0 * d1, a0 * b1 - b0 * a1
            v1x, v1y, v1z = b0 * d2 - d0 * b2, d0 * a2 - a0 * d2, a0 * b2 - b0 * a2
            v2x, v2y, v2z = b1 * d2 - d1 * b2, d1 * a2 - a1 * d2, a1 * b2 - b1 * a2
            n0 = v0x * v0x + v0y * v0y + v0z * v0z
            n1 = v1x * v1x + v1y * v1y + v1z * v1z
            n2 = v2x * v2x + v2y * v2y + v2z * v2z
            use0 = (n0 >= n1) & (n0 >= n2)
            use1 = jnp.logical_not(use0) & (n1 >= n2)
            vx = jnp.where(use0, v0x, jnp.where(use1, v1x, v2x))
            vy = jnp.where(use0, v0y, jnp.where(use1, v1y, v2y))
            vz = jnp.where(use0, v0z, jnp.where(use1, v1z, v2z))
            nmax = jnp.maximum(jnp.maximum(n0, n1), n2)
            degen = nmax < 1e-24
            vx = jnp.where(degen, 0.0, vx)
            vy = jnp.where(degen, 0.0, vy)
            vz = jnp.where(degen, 1.0, vz)
            inv_len = lax.rsqrt(jnp.maximum(vx * vx + vy * vy + vz * vz, 1e-30))
            px, py, pz = vx * inv_len, vy * inv_len, vz * inv_len

            # Orient with the controller's forward axis: rotate (0,0,1) by
            # the Unity quaternion (x, y, z, w) and flip if needed.
            qx = q_ref[0:1, 0:1]
            qy = q_ref[0:1, 1:2]
            qz = q_ref[0:1, 2:3]
            qw = q_ref[0:1, 3:4]
            zx = 2.0 * (qx * qz + qw * qy)
            zy = 2.0 * (qy * qz - qw * qx)
            zz = 1.0 - 2.0 * (qx * qx + qy * qy)
            sgn = jnp.where(zx * px + zy * py + zz * pz < 0.0, -1.0, 1.0)
            px, py, pz = px * sgn, py * sgn, pz * sgn

            # Basis rows: right = up x pca_z, up = reference axis,
            # fwd = right x up.  Translation t = B @ refPos folded in.
            ux = ax_ref[0:1, 0:1]
            uy = ax_ref[0:1, 1:2]
            uz = ax_ref[0:1, 2:3]
            rx, ry, rz = uy * pz - uz * py, uz * px - ux * pz, ux * py - uy * px
            fx, fy, fz = ry * uz - rz * uy, rz * ux - rx * uz, rx * uy - ry * ux
            r0 = ref_ref[0:1, :]
            r1 = ref_ref[1:2, :]
            r2 = ref_ref[2:3, :]
            rows = ((rx, ry, rz), (ux, uy, uz), (fx, fy, fz))
            for i, (bi0, bi1, bi2) in enumerate(rows):
                bas_ref[i:i + 1, 0:1] = bi0
                bas_ref[i:i + 1, 1:2] = bi1
                bas_ref[i:i + 1, 2:3] = bi2
                bas_ref[i:i + 1, 3:4] = bi0 * r0 + bi1 * r1 + bi2 * r2

    # ---------------------- phase 1: apply basis ----------------------------
    @pl.when(p == 1)
    def _transform_phase():
        x = x_ref[...]                                       # (3, tk)
        b = bas_ref[...]                                     # (3, 4)
        o_ref[...] = (b[:, 0:1] * x[0:1, :]
                      + b[:, 1:2] * x[1:2, :]
                      + b[:, 2:3] * x[2:3, :]
                      - b[:, 3:4])                           # B@x - B@ref


def _fused_controller_transform(xpos, qrot, ref_axis):
    """xpos (3, T) f32, qrot (4,) f32, ref_axis (3,) f32 -> (3, T) f32."""
    T = int(xpos.shape[1])
    if T <= _SINGLE_BLOCK_T:
        tk, steps = T, 1          # whole-T block stays resident across phases
    else:
        tk = _TILE_T
        steps = -(-T // tk)       # ceil-div; partial tail masked in-kernel
    mask_tail = (steps * tk != T)

    kernel = functools.partial(_fused_kernel, t_total=T, tk=tk,
                               mask_tail=mask_tail)
    grid_spec = pltpu.PrefetchScalarGridSpec(
        num_scalar_prefetch=0,
        grid=(2, steps),
        in_specs=[pl.BlockSpec((1, 4), lambda p, k: (0, 0)),   # quaternion
                  pl.BlockSpec((1, 3), lambda p, k: (0, 0)),   # reference axis
                  pl.BlockSpec((3, tk), lambda p, k: (0, k))], # positions
        # During phase 0 the output index stays at block 0 (never written
        # back); phase 1 visits each block exactly once.
        out_specs=pl.BlockSpec((3, tk), lambda p, k: (0, k * p)),
        scratch_shapes=[pltpu.VMEM((3, 3), jnp.float32),   # packed stats
                        pltpu.VMEM((3, 1), jnp.float32),   # refPos column
                        pltpu.VMEM((3, 4), jnp.float32)])  # basis | translation

    return pl.pallas_call(
        kernel,
        out_shape=jax.ShapeDtypeStruct((3, T), jnp.float32),
        grid_spec=grid_spec,
        compiler_params=pltpu.CompilerParams(
            dimension_semantics=("arbitrary", "arbitrary")),
    )(qrot.reshape(1, 4).astype(jnp.float32),
      ref_axis.reshape(1, 3).astype(jnp.float32),
      xpos.astype(jnp.float32))


# --------------------------------- module -----------------------------------

class TSControllerCoordinateTransform:
    """JAX/Pallas port of the PyTorch TSControllerCoordinateTransform module."""

    def __init__(self, position_indices, rotation_indices, reference_axis,
                 additional_feature_indices=None):
        self.position_indices = np.asarray(position_indices, np.int32)
        self.rotation_indices = np.asarray(rotation_indices, np.int32)
        self.reference_axis = jnp.asarray(reference_axis, jnp.float32)
        self.additional_feature_indices = (
            None if additional_feature_indices is None
            else np.asarray(additional_feature_indices, np.int32))
        # Contiguous position rows lower to a static slice (no HBM gather).
        p = self.position_indices
        self._pos_start = (int(p[0]) if (p.size == 3
                                         and np.all(np.diff(p) == 1))
                           else None)
        self._forward = jax.jit(self._forward_impl)

    def _forward_impl(self, x):
        if self._pos_start is not None:
            s = self._pos_start
            xpos = x[0, s:s + 3, :].astype(jnp.float32)            # (3, T)
        else:
            # TODO(synk): non-contiguous position rows still use an XLA
            # gather; fusing it would need per-row pl.Element index maps with
            # scalar-prefetched row indices.
            xpos = x[0, self.position_indices, :].astype(jnp.float32)
        qrot = x[0, self.rotation_indices, 0].astype(jnp.float32)   # (4,)

        new_x = _fused_controller_transform(xpos, qrot, self.reference_axis)
        new_x = new_x[None]                                         # (1, 3, T)

        if self.additional_feature_indices is not None:
            add = x[:, self.additional_feature_indices, :].astype(jnp.float32)
            # torch.cat default is dim=0 (as written in the reference module).
            new_x = jnp.concatenate([new_x, add], axis=0)
        return new_x

    def __call__(self, x):
        assert x.ndim == 3 and x.shape[0] == 1, "batch size > 1 not supported"
        return self._forward(x)


# ---------------------------- pure-JAX reference ----------------------------

def _quat_rotate_unit_z(q):
    qx, qy, qz, qw = q[0], q[1], q[2], q[3]
    return jnp.stack([2.0 * (qx * qz + qw * qy),
                      2.0 * (qy * qz - qw * qx),
                      1.0 - 2.0 * (qx * qx + qy * qy)])


def _reference(x, pos_idx, rot_idx, ref_axis):
    Xpos = x[:, pos_idx, :].astype(jnp.float32)                 # (1, 3, T)
    Qrot = x[0, rot_idx, 0].astype(jnp.float32)                 # (4,)
    refPos = Xpos[:, :, 0]
    T = Xpos.shape[2]
    xm = Xpos - jnp.mean(Xpos, axis=2, keepdims=True)
    cov = (1.0 / (T - 1)) * jnp.matmul(xm, jnp.transpose(xm, (0, 2, 1)))
    _, v = jnp.linalg.eigh(cov[0])
    pca_z = v[:, -1]
    z_fwd = _quat_rotate_unit_z(Qrot)
    pca_z = jnp.where(jnp.dot(z_fwd, pca_z) < 0.0, -pca_z, pca_z)
    new_right = jnp.cross(ref_axis, pca_z)
    new_fwd = jnp.cross(new_right, ref_axis)
    new_basis = jnp.stack([new_right, ref_axis, new_fwd])
    return jnp.matmul(new_basis[None], Xpos - refPos[:, :, None])


# ----------------------------------- main ------------------------------------

if __name__ == "__main__":
    key = jax.random.PRNGKey(0)
    F, T = 16, 256
    k1, k2 = jax.random.split(key, 2)

    # Background features.
    x = jax.random.normal(k1, (1, F, T), dtype=jnp.float32)
    # Position rows (0,1,2): dominant straight-line trajectory with a DC
    # offset plus small noise so the PCA direction is well conditioned.
    t = jnp.linspace(-1.0, 1.0, T)
    direction = jnp.array([0.6, 0.1, 0.8], dtype=jnp.float32)
    offset = jnp.array([2.0, -1.0, 3.0], dtype=jnp.float32)
    pos = (offset[:, None] + direction[:, None] * t[None, :]
           + 0.02 * jax.random.normal(k2, (3, T), dtype=jnp.float32))
    x = x.at[0, 0:3, :].set(pos)
    # Rotation rows (3..6): fixed unit quaternion (x, y, z, w) at t = 0 whose
    # rotated +z roughly aligns with the trajectory direction.
    quat = jnp.array([0.1, 0.2, 0.3, 0.9], dtype=jnp.float32)
    quat = quat / jnp.linalg.norm(quat)
    x = x.at[0, 3:7, 0].set(quat)

    position_indices = np.arange(3, dtype=np.int32)
    rotation_indices = np.arange(3, 7, dtype=np.int32)
    reference_axis = jnp.array([0.0, 1.0, 0.0], dtype=jnp.float32)

    module = TSControllerCoordinateTransform(
        position_indices=position_indices,
        rotation_indices=rotation_indices,
        reference_axis=reference_axis,
        additional_feature_indices=None,
    )

    out = jax.block_until_ready(module(x))
    ref = jax.block_until_ready(
        _reference(x, position_indices, rotation_indices, reference_axis))

    assert out.shape == (1, 3, T), out.shape
    max_err = float(jnp.max(jnp.abs(out - ref)))
    assert jnp.allclose(out, ref, atol=2e-3, rtol=2e-3), max_err
    print("KERNEL_OK")
</pallas_src>

<mosaic_0001>
module attributes {stable_mosaic.version = 11 : i64} {
  func.func @_fused_kernel(%arg0: i32, %arg1: i32, %arg2: memref<1x4xf32, #tpu.memory_space<vmem>>, %arg3: memref<1x3xf32, #tpu.memory_space<vmem>>, %arg4: memref<3x256xf32, #tpu.memory_space<vmem>>, %arg5: memref<3x256xf32, #tpu.memory_space<vmem>>, %arg6: memref<3x3xf32, #tpu.memory_space<vmem>>, %arg7: memref<3x1xf32, #tpu.memory_space<vmem>>, %arg8: memref<3x4xf32, #tpu.memory_space<vmem>>) attributes {dimension_semantics = [#tpu.dimension_semantics<arbitrary>, #tpu.dimension_semantics<arbitrary>], iteration_bounds = array<i64: 2, 1>, scalar_prefetch = 0 : i64, scratch_operands = 3 : i64, tpu.core_type = #tpu.core_type<tc>, window_params = [{pipeline_mode = #tpu.pipeline_mode<synchronous>, transform_indices = @transform_0, window_bounds = array<i64: 1, 4>}, {pipeline_mode = #tpu.pipeline_mode<synchronous>, transform_indices = @transform_1, window_bounds = array<i64: 1, 3>}, {transform_indices = @transform_2, window_bounds = array<i64: 3, 256>}, {transform_indices = @transform_3, window_bounds = array<i64: 3, 256>}]} {
    %c0_i32 = arith.constant 0 : i32
    %0 = arith.cmpi eq, %arg0, %c0_i32 : i32
    %1 = arith.extui %0 : i1 to i32
    %c0_i32_0 = arith.constant 0 : i32
    %2 = arith.cmpi ne, %1, %c0_i32_0 : i32
    scf.if %2 {
      %c0_i32_2 = arith.constant 0 : i32
      %6 = arith.cmpi eq, %arg1, %c0_i32_2 : i32
      %7 = arith.extui %6 : i1 to i32
      %c0_i32_3 = arith.constant 0 : i32
      %8 = arith.cmpi ne, %7, %c0_i32_3 : i32
      scf.if %8 {
        %cst_31 = arith.constant 0.000000e+00 : f32
        %48 = vector.broadcast %cst_31 : f32 to vector<3x3xf32>
        %c0_32 = arith.constant 0 : index
        %c0_33 = arith.constant 0 : index
        %49 = vector.load %arg6[%c0_32, %c0_33] : memref<3x3xf32, #tpu.memory_space<vmem>>, vector<3x3xf32>
        tpu.vector_store %arg6[%c0_32, %c0_33], %48 {strides = array<i32>} : memref<3x3xf32, #tpu.memory_space<vmem>>, vector<3x3xf32>,
        %c0_34 = arith.constant 0 : index
        %c0_35 = arith.constant 0 : index
        %50 = vector.load %arg4[%c0_34, %c0_35] : memref<3x256xf32, #tpu.memory_space<vmem>>, vector<3x1xf32>
        %c0_36 = arith.constant 0 : index
        %c0_37 = arith.constant 0 : index
        %51 = vector.load %arg7[%c0_36, %c0_37] : memref<3x1xf32, #tpu.memory_space<vmem>>, vector<3x1xf32>
        tpu.vector_store %arg7[%c0_36, %c0_37], %50 {strides = array<i32>} : memref<3x1xf32, #tpu.memory_space<vmem>>, vector<3x1xf32>,
      } else {
      }
      %c0 = arith.constant 0 : index
      %c0_4 = arith.constant 0 : index
      %9 = vector.load %arg4[%c0, %c0_4] : memref<3x256xf32, #tpu.memory_space<vmem>>, vector<3x256xf32>
      %c0_5 = arith.constant 0 : index
      %c0_6 = arith.constant 0 : index
      %10 = vector.load %arg7[%c0_5, %c0_6] : memref<3x1xf32, #tpu.memory_space<vmem>>, vector<3x1xf32>
      %11 = vector.broadcast %10 : vector<3x1xf32> to vector<3x256xf32>
      %12 = arith.subf %9, %11 : vector<3x256xf32>
      %13 = vector.extract_strided_slice %12 {offsets = [0, 0], sizes = [1, 256], strides = [1, 1]} : vector<3x256xf32> to vector<1x256xf32>
      %14 = vector.extract_strided_slice %12 {offsets = [1, 0], sizes = [1, 256], strides = [1, 1]} : vector<3x256xf32> to vector<1x256xf32>
      %15 = vector.extract_strided_slice %12 {offsets = [2, 0], sizes = [1, 256], strides = [1, 1]} : vector<3x256xf32> to vector<1x256xf32>
      %16 = arith.mulf %12, %12 : vector<3x256xf32>
      %cst = arith.constant dense<0.000000e+00> : vector<3xf32>
      %17 = vector.multi_reduction <add>, %16, %cst [1] : vector<3x256xf32> to vector<3xf32>
      %18 = vector.shape_cast %17 : vector<3xf32> to vector<3x1xf32>
      %cst_7 = arith.constant dense<0.000000e+00> : vector<3xf32>
      %19 = vector.multi_reduction <add>, %12, %cst_7 [1] : vector<3x256xf32> to vector<3xf32>
      %20 = vector.shape_cast %19 : vector<3xf32> to vector<3x1xf32>
      %21 = arith.mulf %13, %14 : vector<1x256xf32>
      %cst_8 = arith.constant dense<0.000000e+00> : vector<1xf32>
      %22 = vector.multi_reduction <add>, %21, %cst_8 [1] : vector<1x256xf32> to vector<1xf32>
      %23 = vector.shape_cast %22 : vector<1xf32> to vector<1x1xf32>
      %24 = arith.mulf %14, %15 : vector<1x256xf32>
      %cst_9 = arith.constant dense<0.000000e+00> : vector<1xf32>
      %25 = vector.multi_reduction <add>, %24, %cst_9 [1] : vector<1x256xf32> to vector<1xf32>
      %26 = vector.shape_cast %25 : vector<1xf32> to vector<1x1xf32>
      %27 = arith.mulf %13, %15 : vector<1x256xf32>
      %cst_10 = arith.constant dense<0.000000e+00> : vector<1xf32>
      %28 = vector.multi_reduction <add>, %27, %cst_10 [1] : vector<1x256xf32> to vector<1xf32>
      %29 = vector.shape_cast %28 : vector<1xf32> to vector<1x1xf32>
      %c0_11 = arith.constant 0 : index
      %c0_12 = arith.constant 0 : index
      %30 = vector.load %arg6[%c0_11, %c0_12] : memref<3x3xf32, #tpu.memory_space<vmem>>, vector<3x1xf32>
      %31 = arith.addf %30, %18 : vector<3x1xf32>
      %c0_13 = arith.constant 0 : index
      %c0_14 = arith.constant 0 : index
      %32 = vector.load %arg6[%c0_13, %c0_14] : memref<3x3xf32, #tpu.memory_space<vmem>>, vector<3x1xf32>
      tpu.vector_store %arg6[%c0_13, %c0_14], %31 {strides = array<i32>} : memref<3x3xf32, #tpu.memory_space<vmem>>, vector<3x1xf32>,
      %c0_15 = arith.constant 0 : index
      %c1 = arith.constant 1 : index
      %33 = vector.load %arg6[%c0_15, %c1] : memref<3x3xf32, #tpu.memory_space<vmem>>, vector<3x1xf32>
      %34 = arith.addf %33, %20 : vector<3x1xf32>
      %c0_16 = arith.constant 0 : index
      %c1_17 = arith.constant 1 : index
      %35 = vector.load %arg6[%c0_16, %c1_17] : memref<3x3xf32, #tpu.memory_space<vmem>>, vector<3x1xf32>
      tpu.vector_store %arg6[%c0_16, %c1_17], %34 {strides = array<i32>} : memref<3x3xf32, #tpu.memory_space<vmem>>, vector<3x1xf32>,
      %c0_18 = arith.constant 0 : index
      %c2 = arith.constant 2 : index
      %36 = vector.load %arg6[%c0_18, %c2] : memref<3x3xf32, #tpu.memory_space<vmem>>, vector<1x1xf32>
      %37 = arith.addf %36, %23 : vector<1x1xf32>
      %c0_19 = arith.constant 0 : index
      %c2_20 = arith.constant 2 : index
      %38 = vector.load %arg6[%c0_19, %c2_20] : memref<3x3xf32, #tpu.memory_space<vmem>>, vector<1x1xf32>
      tpu.vector_store %arg6[%c0_19, %c2_20], %37 {strides = array<i32>} : memref<3x3xf32, #tpu.memory_space<vmem>>, vector<1x1xf32>,
      %c1_21 = arith.constant 1 : index
      %c2_22 = arith.constant 2 : index
      %39 = vector.load %arg6[%c1_21, %c2_22] : memref<3x3xf32, #tpu.memory_space<vmem>>, vector<1x1xf32>
      %40 = arith.addf %39, %26 : vector<1x1xf32>
      %c1_23 = arith.constant 1 : index
      %c2_24 = arith.constant 2 : index
      %41 = vector.load %arg6[%c1_23, %c2_24] : memref<3x3xf32, #tpu.memory_space<vmem>>, vector<1x1xf32>
      tpu.vector_store %arg6[%c1_23, %c2_24], %40 {strides = array<i32>} : memref<3x3xf32, #tpu.memory_space<vmem>>, vector<1x1xf32>,
      %c2_25 = arith.constant 2 : index
      %c2_26 = arith.constant 2 : index
      %42 = vector.load %arg6[%c2_25, %c2_26] : memref<3x3xf32, #tpu.memory_space<vmem>>, vector<1x1xf32>
      %43 = arith.addf %42, %29 : vector<1x1xf32>
      %c2_27 = arith.constant 2 : index
      %c2_28 = arith.constant 2 : index
      %44 = vector.load %arg6[%c2_27, %c2_28] : memref<3x3xf32, #tpu.memory_space<vmem>>, vector<1x1xf32>
      tpu.vector_store %arg6[%c2_27, %c2_28], %43 {strides = array<i32>} : memref<3x3xf32, #tpu.memory_space<vmem>>, vector<1x1xf32>,
      %c0_i32_29 = arith.constant 0 : i32
      %45 = arith.cmpi eq, %arg1, %c0_i32_29 : i32
      %46 = arith.extui %45 : i1 to i32
      %c0_i32_30 = arith.constant 0 : i32
      %47 = arith.cmpi ne, %46, %c0_i32_30 : i32
      scf.if %47 {
        %c0_31 = arith.constant 0 : index
        %c0_32 = arith.constant 0 : index
        %48 = vector.load %arg6[%c0_31, %c0_32] : memref<3x3xf32, #tpu.memory_space<vmem>>, vector<3x3xf32>
        %49 = vector.extract_strided_slice %48 {offsets = [0, 0], sizes = [3, 1], strides = [1, 1]} : vector<3x3xf32> to vector<3x1xf32>
        %50 = vector.extract_strided_slice %48 {offsets = [0, 1], sizes = [3, 1], strides = [1, 1]} : vector<3x3xf32> to vector<3x1xf32>
        %51 = vector.extract_strided_slice %48 {offsets = [0, 2], sizes = [3, 1], strides = [1, 1]} : vector<3x3xf32> to vector<3x1xf32>
        %52 = vector.extract_strided_slice %50 {offsets = [0, 0], sizes = [1, 1], strides = [1, 1]} : vector<3x1xf32> to vector<1x1xf32>
        %53 = vector.extract_strided_slice %50 {offsets = [1, 0], sizes = [1, 1], strides = [1, 1]} : vector<3x1xf32> to vector<1x1xf32>
        %54 = vector.extract_strided_slice %50 {offsets = [2, 0], sizes = [1, 1], strides = [1, 1]} : vector<3x1xf32> to vector<1x1xf32>
        %55 = vector.extract_strided_slice %49 {offsets = [0, 0], sizes = [1, 1], strides = [1, 1]} : vector<3x1xf32> to vector<1x1xf32>
        %56 = arith.mulf %52, %52 : vector<1x1xf32>
        %cst_33 = arith.constant 3.906250e-03 : f32
        %57 = vector.broadcast %cst_33 : f32 to vector<1x1xf32>
        %58 = arith.mulf %56, %57 : vector<1x1xf32>
        %59 = arith.subf %55, %58 : vector<1x1xf32>
        %60 = vector.extract_strided_slice %49 {offsets = [1, 0], sizes = [1, 1], strides = [1, 1]} : vector<3x1xf32> to vector<1x1xf32>
        %61 = arith.mulf %53, %53 : vector<1x1xf32>
        %cst_34 = arith.constant 3.906250e-03 : f32
        %62 = vector.broadcast %cst_34 : f32 to vector<1x1xf32>
        %63 = arith.mulf %61, %62 : vector<1x1xf32>
        %64 = arith.subf %60, %63 : vector<1x1xf32>
        %65 = vector.extract_strided_slice %49 {offsets = [2, 0], sizes = [1, 1], strides = [1, 1]} : vector<3x1xf32> to vector<1x1xf32>
        %66 = arith.mulf %54, %54 : vector<1x1xf32>
        %cst_35 = arith.constant 3.906250e-03 : f32
        %67 = vector.broadcast %cst_35 : f32 to vector<1x1xf32>
        %68 = arith.mulf %66, %67 : vector<1x1xf32>
        %69 = arith.subf %65, %68 : vector<1x1xf32>
        %70 = vector.extract_strided_slice %51 {offsets = [0, 0], sizes = [1, 1], strides = [1, 1]} : vector<3x1xf32> to vector<1x1xf32>
        %71 = arith.mulf %52, %53 : vector<1x1xf32>
        %cst_36 = arith.constant 3.906250e-03 : f32
        %72 = vector.broadcast %cst_36 : f32 to vector<1x1xf32>
        %73 = arith.mulf %71, %72 : vector<1x1xf32>
        %74 = arith.subf %70, %73 : vector<1x1xf32>
        %75 = vector.extract_strided_slice %51 {offsets = [1, 0], sizes = [1, 1], strides = [1, 1]} : vector<3x1xf32> to vector<1x1xf32>
        %76 = arith.mulf %53, %54 : vector<1x1xf32>
        %cst_37 = arith.constant 3.906250e-03 : f32
        %77 = vector.broadcast %cst_37 : f32 to vector<1x1xf32>
        %78 = arith.mulf %76, %77 : vector<1x1xf32>
        %79 = arith.subf %75, %78 : vector<1x1xf32>
        %80 = vector.extract_strided_slice %51 {offsets = [2, 0], sizes = [1, 1], strides = [1, 1]} : vector<3x1xf32> to vector<1x1xf32>
        %81 = arith.mulf %52, %54 : vector<1x1xf32>
        %cst_38 = arith.constant 3.906250e-03 : f32
        %82 = vector.broadcast %cst_38 : f32 to vector<1x1xf32>
        %83 = arith.mulf %81, %82 : vector<1x1xf32>
        %84 = arith.subf %80, %83 : vector<1x1xf32>
        %85 = math.absf %59 : vector<1x1xf32>
        %86 = math.absf %64 : vector<1x1xf32>
        %87 = arith.maximumf %85, %86 : vector<1x1xf32>
        %88 = math.absf %69 : vector<1x1xf32>
        %89 = math.absf %74 : vector<1x1xf32>
        %90 = arith.maximumf %88, %89 : vector<1x1xf32>
        %91 = arith.maximumf %87, %90 : vector<1x1xf32>
        %92 = math.absf %79 : vector<1x1xf32>
        %93 = math.absf %84 : vector<1x1xf32>
        %94 = arith.maximumf %92, %93 : vector<1x1xf32>
        %95 = arith.maximumf %91, %94 : vector<1x1xf32>
        %cst_39 = arith.constant 1.000000e-30 : f32
        %96 = vector.broadcast %cst_39 : f32 to vector<1x1xf32>
        %97 = arith.maximumf %95, %96 : vector<1x1xf32>
        %cst_40 = arith.constant 1.000000e+00 : f32
        %98 = vector.broadcast %cst_40 : f32 to vector<1x1xf32>
        %99 = arith.divf %98, %97 : vector<1x1xf32>
        %100 = arith.mulf %59, %99 : vector<1x1xf32>
        %101 = arith.mulf %64, %99 : vector<1x1xf32>
        %102 = arith.mulf %69, %99 : vector<1x1xf32>
        %103 = arith.mulf %74, %99 : vector<1x1xf32>
        %104 = arith.mulf %79, %99 : vector<1x1xf32>
        %105 = arith.mulf %84, %99 : vector<1x1xf32>
        %106 = arith.addf %100, %101 : vector<1x1xf32>
        %107 = arith.addf %106, %102 : vector<1x1xf32>
        %108 = arith.mulf %100, %101 : vector<1x1xf32>
        %109 = arith.mulf %100, %102 : vector<1x1xf32>
        %110 = arith.addf %108, %109 : vector<1x1xf32>
        %111 = arith.mulf %101, %102 : vector<1x1xf32>
        %112 = arith.addf %110, %111 : vector<1x1xf32>
        %113 = arith.mulf %103, %103 : vector<1x1xf32>
        %114 = arith.subf %112, %113 : vector<1x1xf32>
        %115 = arith.mulf %105, %105 : vector<1x1xf32>
        %116 = arith.subf %114, %115 : vector<1x1xf32>
        %117 = arith.mulf %104, %104 : vector<1x1xf32>
        %118 = arith.subf %116, %117 : vector<1x1xf32>
        %119 = arith.mulf %101, %102 : vector<1x1xf32>
        %120 = arith.mulf %104, %104 : vector<1x1xf32>
        %121 = arith.subf %119, %120 : vector<1x1xf32>
        %122 = arith.mulf %100, %121 : vector<1x1xf32>
        %123 = arith.mulf %103, %102 : vector<1x1xf32>
        %124 = arith.mulf %104, %105 : vector<1x1xf32>
        %125 = arith.subf %123, %124 : vector<1x1xf32>
        %126 = arith.mulf %103, %125 : vector<1x1xf32>
        %127 = arith.subf %122, %126 : vector<1x1xf32>
        %128 = arith.mulf %103, %104 : vector<1x1xf32>
        %129 = arith.mulf %101, %105 : vector<1x1xf32>
        %130 = arith.subf %128, %129 : vector<1x1xf32>
        %131 = arith.mulf %105, %130 : vector<1x1xf32>
        %132 = arith.addf %127, %131 : vector<1x1xf32>
        %133 = math.absf %103 : vector<1x1xf32>
        %134 = arith.addf %100, %133 : vector<1x1xf32>
        %135 = math.absf %105 : vector<1x1xf32>
        %136 = arith.addf %134, %135 : vector<1x1xf32>
        %137 = math.absf %103 : vector<1x1xf32>
        %138 = arith.addf %101, %137 : vector<1x1xf32>
        %139 = math.absf %104 : vector<1x1xf32>
        %140 = arith.addf %138, %139 : vector<1x1xf32>
        %141 = math.absf %105 : vector<1x1xf32>
        %142 = arith.addf %102, %141 : vector<1x1xf32>
        %143 = math.absf %104 : vector<1x1xf32>
        %144 = arith.addf %142, %143 : vector<1x1xf32>
        %145 = arith.maximumf %136, %140 : vector<1x1xf32>
        %146 = arith.maximumf %145, %144 : vector<1x1xf32>
        %147 = arith.subf %146, %107 : vector<1x1xf32>
        %148 = arith.mulf %147, %146 : vector<1x1xf32>
        %149 = arith.addf %148, %118 : vector<1x1xf32>
        %150 = arith.mulf %149, %146 : vector<1x1xf32>
        %151 = arith.subf %150, %132 : vector<1x1xf32>
        %cst_41 = arith.constant 3.000000e+00 : f32
        %152 = vector.broadcast %cst_41 : f32 to vector<1x1xf32>
        %153 = arith.mulf %152, %146 : vector<1x1xf32>
        %cst_42 = arith.constant 2.000000e+00 : f32
        %154 = vector.broadcast %cst_42 : f32 to vector<1x1xf32>
        %155 = arith.mulf %154, %107 : vector<1x1xf32>
        %156 = arith.subf %153, %155 : vector<1x1xf32>
        %157 = arith.mulf %156, %146 : vector<1x1xf32>
        %158 = arith.addf %157, %118 : vector<1x1xf32>
        %159 = math.absf %158 : vector<1x1xf32>
        %cst_43 = arith.constant 1.000000e-30 : f32
        %160 = vector.broadcast %cst_43 : f32 to vector<1x1xf32>
        %161 = arith.cmpf ogt, %159, %160 : vector<1x1xf32>
        %162 = arith.divf %151, %158 : vector<1x1xf32>
        %cst_44 = arith.constant 0.000000e+00 : f32
        %163 = vector.broadcast %cst_44 : f32 to vector<1x1xf32>
        %164 = arith.select %161, %162, %163 : vector<1x1xi1>, vector<1x1xf32>
        %165 = arith.subf %146, %164 : vector<1x1xf32>
        %166 = arith.subf %165, %107 : vector<1x1xf32>
        %167 = arith.mulf %166, %165 : vector<1x1xf32>
        %168 = arith.addf %167, %118 : vector<1x1xf32>
        %169 = arith.mulf %168, %165 : vector<1x1xf32>
        %170 = arith.subf %169, %132 : vector<1x1xf32>
        %cst_45 = arith.constant 3.000000e+00 : f32
        %171 = vector.broadcast %cst_45 : f32 to vector<1x1xf32>
        %172 = arith.mulf %171, %165 : vector<1x1xf32>
        %cst_46 = arith.constant 2.000000e+00 : f32
        %173 = vector.broadcast %cst_46 : f32 to vector<1x1xf32>
        %174 = arith.mulf %173, %107 : vector<1x1xf32>
        %175 = arith.subf %172, %174 : vector<1x1xf32>
        %176 = arith.mulf %175, %165 : vector<1x1xf32>
        %177 = arith.addf %176, %118 : vector<1x1xf32>
        %178 = math.absf %177 : vector<1x1xf32>
        %cst_47 = arith.constant 1.000000e-30 : f32
        %179 = vector.broadcast %cst_47 : f32 to vector<1x1xf32>
        %180 = arith.cmpf ogt, %178, %179 : vector<1x1xf32>
        %181 = arith.divf %170, %177 : vector<1x1xf32>
        %cst_48 = arith.constant 0.000000e+00 : f32
        %182 = vector.broadcast %cst_48 : f32 to vector<1x1xf32>
        %183 = arith.select %180, %181, %182 : vector<1x1xi1>, vector<1x1xf32>
        %184 = arith.subf %165, %183 : vector<1x1xf32>
        %185 = arith.subf %184, %107 : vector<1x1xf32>
        %186 = arith.mulf %185, %184 : vector<1x1xf32>
        %187 = arith.addf %186, %118 : vector<1x1xf32>
        %188 = arith.mulf %187, %184 : vector<1x1xf32>
        %189 = arith.subf %188, %132 : vector<1x1xf32>
        %cst_49 = arith.constant 3.000000e+00 : f32
        %190 = vector.broadcast %cst_49 : f32 to vector<1x1xf32>
        %191 = arith.mulf %190, %184 : vector<1x1xf32>
        %cst_50 = arith.constant 2.000000e+00 : f32
        %192 = vector.broadcast %cst_50 : f32 to vector<1x1xf32>
        %193 = arith.mulf %192, %107 : vector<1x1xf32>
        %194 = arith.subf %191, %193 : vector<1x1xf32>
        %195 = arith.mulf %194, %184 : vector<1x1xf32>
        %196 = arith.addf %195, %118 : vector<1x1xf32>
        %197 = math.absf %196 : vector<1x1xf32>
        %cst_51 = arith.constant 1.000000e-30 : f32
        %198 = vector.broadcast %cst_51 : f32 to vector<1x1xf32>
        %199 = arith.cmpf ogt, %197, %198 : vector<1x1xf32>
        %200 = arith.divf %189, %196 : vector<1x1xf32>
        %cst_52 = arith.constant 0.000000e+00 : f32
        %201 = vector.broadcast %cst_52 : f32 to vector<1x1xf32>
        %202 = arith.select %199, %200, %201 : vector<1x1xi1>, vector<1x1xf32>
        %203 = arith.subf %184, %202 : vector<1x1xf32>
        %204 = arith.subf %203, %107 : vector<1x1xf32>
        %205 = arith.mulf %204, %203 : vector<1x1xf32>
        %206 = arith.addf %205, %118 : vector<1x1xf32>
        %207 = arith.mulf %206, %203 : vector<1x1xf32>
        %208 = arith.subf %207, %132 : vector<1x1xf32>
        %cst_53 = arith.constant 3.000000e+00 : f32
        %209 = vector.broadcast %cst_53 : f32 to vector<1x1xf32>
        %210 = arith.mulf %209, %203 : vector<1x1xf32>
        %cst_54 = arith.constant 2.000000e+00 : f32
        %211 = vector.broadcast %cst_54 : f32 to vector<1x1xf32>
        %212 = arith.mulf %211, %107 : vector<1x1xf32>
        %213 = arith.subf %210, %212 : vector<1x1xf32>
        %214 = arith.mulf %213, %203 : vector<1x1xf32>
        %215 = arith.addf %214, %118 : vector<1x1xf32>
        %216 = math.absf %215 : vector<1x1xf32>
        %cst_55 = arith.constant 1.000000e-30 : f32
        %217 = vector.broadcast %cst_55 : f32 to vector<1x1xf32>
        %218 = arith.cmpf ogt, %216, %217 : vector<1x1xf32>
        %219 = arith.divf %208, %215 : vector<1x1xf32>
        %cst_56 = arith.constant 0.000000e+00 : f32
        %220 = vector.broadcast %cst_56 : f32 to vector<1x1xf32>
        %221 = arith.select %218, %219, %220 : vector<1x1xi1>, vector<1x1xf32>
        %222 = arith.subf %203, %221 : vector<1x1xf32>
        %223 = arith.subf %222, %107 : vector<1x1xf32>
        %224 = arith.mulf %223, %222 : vector<1x1xf32>
        %225 = arith.addf %224, %118 : vector<1x1xf32>
        %226 = arith.mulf %225, %222 : vector<1x1xf32>
        %227 = arith.subf %226, %132 : vector<1x1xf32>
        %cst_57 = arith.constant 3.000000e+00 : f32
        %228 = vector.broadcast %cst_57 : f32 to vector<1x1xf32>
        %229 = arith.mulf %228, %222 : vector<1x1xf32>
        %cst_58 = arith.constant 2.000000e+00 : f32
        %230 = vector.broadcast %cst_58 : f32 to vector<1x1xf32>
        %231 = arith.mulf %230, %107 : vector<1x1xf32>
        %232 = arith.subf %229, %231 : vector<1x1xf32>
        %233 = arith.mulf %232, %222 : vector<1x1xf32>
        %234 = arith.addf %233, %118 : vector<1x1xf32>
        %235 = math.absf %234 : vector<1x1xf32>
        %cst_59 = arith.constant 1.000000e-30 : f32
        %236 = vector.broadcast %cst_59 : f32 to vector<1x1xf32>
        %237 = arith.cmpf ogt, %235, %236 : vector<1x1xf32>
        %238 = arith.divf %227, %234 : vector<1x1xf32>
        %cst_60 = arith.constant 0.000000e+00 : f32
        %239 = vector.broadcast %cst_60 : f32 to vector<1x1xf32>
        %240 = arith.select %237, %238, %239 : vector<1x1xi1>, vector<1x1xf32>
        %241 = arith.subf %222, %240 : vector<1x1xf32>
        %242 = arith.subf %241, %107 : vector<1x1xf32>
        %243 = arith.mulf %242, %241 : vector<1x1xf32>
        %244 = arith.addf %243, %118 : vector<1x1xf32>
        %245 = arith.mulf %244, %241 : vector<1x1xf32>
        %246 = arith.subf %245, %132 : vector<1x1xf32>
        %cst_61 = arith.constant 3.000000e+00 : f32
        %247 = vector.broadcast %cst_61 : f32 to vector<1x1xf32>
        %248 = arith.mulf %247, %241 : vector<1x1xf32>
        %cst_62 = arith.constant 2.000000e+00 : f32
        %249 = vector.broadcast %cst_62 : f32 to vector<1x1xf32>
        %250 = arith.mulf %249, %107 : vector<1x1xf32>
        %251 = arith.subf %248, %250 : vector<1x1xf32>
        %252 = arith.mulf %251, %241 : vector<1x1xf32>
        %253 = arith.addf %252, %118 : vector<1x1xf32>
        %254 = math.absf %253 : vector<1x1xf32>
        %cst_63 = arith.constant 1.000000e-30 : f32
        %255 = vector.broadcast %cst_63 : f32 to vector<1x1xf32>
        %256 = arith.cmpf ogt, %254, %255 : vector<1x1xf32>
        %257 = arith.divf %246, %253 : vector<1x1xf32>
        %cst_64 = arith.constant 0.000000e+00 : f32
        %258 = vector.broadcast %cst_64 : f32 to vector<1x1xf32>
        %259 = arith.select %256, %257, %258 : vector<1x1xi1>, vector<1x1xf32>
        %260 = arith.subf %241, %259 : vector<1x1xf32>
        %261 = arith.subf %260, %107 : vector<1x1xf32>
        %262 = arith.mulf %261, %260 : vector<1x1xf32>
        %263 = arith.addf %262, %118 : vector<1x1xf32>
        %264 = arith.mulf %263, %260 : vector<1x1xf32>
        %265 = arith.subf %264, %132 : vector<1x1xf32>
        %cst_65 = arith.constant 3.000000e+00 : f32
        %266 = vector.broadcast %cst_65 : f32 to vector<1x1xf32>
        %267 = arith.mulf %266, %260 : vector<1x1xf32>
        %cst_66 = arith.constant 2.000000e+00 : f32
        %268 = vector.broadcast %cst_66 : f32 to vector<1x1xf32>
        %269 = arith.mulf %268, %107 : vector<1x1xf32>
        %270 = arith.subf %267, %269 : vector<1x1xf32>
        %271 = arith.mulf %270, %260 : vector<1x1xf32>
        %272 = arith.addf %271, %118 : vector<1x1xf32>
        %273 = math.absf %272 : vector<1x1xf32>
        %cst_67 = arith.constant 1.000000e-30 : f32
        %274 = vector.broadcast %cst_67 : f32 to vector<1x1xf32>
        %275 = arith.cmpf ogt, %273, %274 : vector<1x1xf32>
        %276 = arith.divf %265, %272 : vector<1x1xf32>
        %cst_68 = arith.constant 0.000000e+00 : f32
        %277 = vector.broadcast %cst_68 : f32 to vector<1x1xf32>
        %278 = arith.select %275, %276, %277 : vector<1x1xi1>, vector<1x1xf32>
        %279 = arith.subf %260, %278 : vector<1x1xf32>
        %280 = arith.subf %279, %107 : vector<1x1xf32>
        %281 = arith.mulf %280, %279 : vector<1x1xf32>
        %282 = arith.addf %281, %118 : vector<1x1xf32>
        %283 = arith.mulf %282, %279 : vector<1x1xf32>
        %284 = arith.subf %283, %132 : vector<1x1xf32>
        %cst_69 = arith.constant 3.000000e+00 : f32
        %285 = vector.broadcast %cst_69 : f32 to vector<1x1xf32>
        %286 = arith.mulf %285, %279 : vector<1x1xf32>
        %cst_70 = arith.constant 2.000000e+00 : f32
        %287 = vector.broadcast %cst_70 : f32 to vector<1x1xf32>
        %288 = arith.mulf %287, %107 : vector<1x1xf32>
        %289 = arith.subf %286, %288 : vector<1x1xf32>
        %290 = arith.mulf %289, %279 : vector<1x1xf32>
        %291 = arith.addf %290, %118 : vector<1x1xf32>
        %292 = math.absf %291 : vector<1x1xf32>
        %cst_71 = arith.constant 1.000000e-30 : f32
        %293 = vector.broadcast %cst_71 : f32 to vector<1x1xf32>
        %294 = arith.cmpf ogt, %292, %293 : vector<1x1xf32>
        %295 = arith.divf %284, %291 : vector<1x1xf32>
        %cst_72 = arith.constant 0.000000e+00 : f32
        %296 = vector.broadcast %cst_72 : f32 to vector<1x1xf32>
        %297 = arith.select %294, %295, %296 : vector<1x1xi1>, vector<1x1xf32>
        %298 = arith.subf %279, %297 : vector<1x1xf32>
        %299 = arith.subf %298, %107 : vector<1x1xf32>
        %300 = arith.mulf %299, %298 : vector<1x1xf32>
        %301 = arith.addf %300, %118 : vector<1x1xf32>
        %302 = arith.mulf %301, %298 : vector<1x1xf32>
        %303 = arith.subf %302, %132 : vector<1x1xf32>
        %cst_73 = arith.constant 3.000000e+00 : f32
        %304 = vector.broadcast %cst_73 : f32 to vector<1x1xf32>
        %305 = arith.mulf %304, %298 : vector<1x1xf32>
        %cst_74 = arith.constant 2.000000e+00 : f32
        %306 = vector.broadcast %cst_74 : f32 to vector<1x1xf32>
        %307 = arith.mulf %306, %107 : vector<1x1xf32>
        %308 = arith.subf %305, %307 : vector<1x1xf32>
        %309 = arith.mulf %308, %298 : vector<1x1xf32>
        %310 = arith.addf %309, %118 : vector<1x1xf32>
        %311 = math.absf %310 : vector<1x1xf32>
        %cst_75 = arith.constant 1.000000e-30 : f32
        %312 = vector.broadcast %cst_75 : f32 to vector<1x1xf32>
        %313 = arith.cmpf ogt, %311, %312 : vector<1x1xf32>
        %314 = arith.divf %303, %310 : vector<1x1xf32>
        %cst_76 = arith.constant 0.000000e+00 : f32
        %315 = vector.broadcast %cst_76 : f32 to vector<1x1xf32>
        %316 = arith.select %313, %314, %315 : vector<1x1xi1>, vector<1x1xf32>
        %317 = arith.subf %298, %316 : vector<1x1xf32>
        %318 = arith.subf %317, %107 : vector<1x1xf32>
        %319 = arith.mulf %318, %317 : vector<1x1xf32>
        %320 = arith.addf %319, %118 : vector<1x1xf32>
        %321 = arith.mulf %320, %317 : vector<1x1xf32>
        %322 = arith.subf %321, %132 : vector<1x1xf32>
        %cst_77 = arith.constant 3.000000e+00 : f32
        %323 = vector.broadcast %cst_77 : f32 to vector<1x1xf32>
        %324 = arith.mulf %323, %317 : vector<1x1xf32>
        %cst_78 = arith.constant 2.000000e+00 : f32
        %325 = vector.broadcast %cst_78 : f32 to vector<1x1xf32>
        %326 = arith.mulf %325, %107 : vector<1x1xf32>
        %327 = arith.subf %324, %326 : vector<1x1xf32>
        %328 = arith.mulf %327, %317 : vector<1x1xf32>
        %329 = arith.addf %328, %118 : vector<1x1xf32>
        %330 = math.absf %329 : vector<1x1xf32>
        %cst_79 = arith.constant 1.000000e-30 : f32
        %331 = vector.broadcast %cst_79 : f32 to vector<1x1xf32>
        %332 = arith.cmpf ogt, %330, %331 : vector<1x1xf32>
        %333 = arith.divf %322, %329 : vector<1x1xf32>
        %cst_80 = arith.constant 0.000000e+00 : f32
        %334 = vector.broadcast %cst_80 : f32 to vector<1x1xf32>
        %335 = arith.select %332, %333, %334 : vector<1x1xi1>, vector<1x1xf32>
        %336 = arith.subf %317, %335 : vector<1x1xf32>
        %337 = arith.subf %336, %107 : vector<1x1xf32>
        %338 = arith.mulf %337, %336 : vector<1x1xf32>
        %339 = arith.addf %338, %118 : vector<1x1xf32>
        %340 = arith.mulf %339, %336 : vector<1x1xf32>
        %341 = arith.subf %340, %132 : vector<1x1xf32>
        %cst_81 = arith.constant 3.000000e+00 : f32
        %342 = vector.broadcast %cst_81 : f32 to vector<1x1xf32>
        %343 = arith.mulf %342, %336 : vector<1x1xf32>
        %cst_82 = arith.constant 2.000000e+00 : f32
        %344 = vector.broadcast %cst_82 : f32 to vector<1x1xf32>
        %345 = arith.mulf %344, %107 : vector<1x1xf32>
        %346 = arith.subf %343, %345 : vector<1x1xf32>
        %347 = arith.mulf %346, %336 : vector<1x1xf32>
        %348 = arith.addf %347, %118 : vector<1x1xf32>
        %349 = math.absf %348 : vector<1x1xf32>
        %cst_83 = arith.constant 1.000000e-30 : f32
        %350 = vector.broadcast %cst_83 : f32 to vector<1x1xf32>
        %351 = arith.cmpf ogt, %349, %350 : vector<1x1xf32>
        %352 = arith.divf %341, %348 : vector<1x1xf32>
        %cst_84 = arith.constant 0.000000e+00 : f32
        %353 = vector.broadcast %cst_84 : f32 to vector<1x1xf32>
        %354 = arith.select %351, %352, %353 : vector<1x1xi1>, vector<1x1xf32>
        %355 = arith.subf %336, %354 : vector<1x1xf32>
        %356 = arith.subf %355, %107 : vector<1x1xf32>
        %357 = arith.mulf %356, %355 : vector<1x1xf32>
        %358 = arith.addf %357, %118 : vector<1x1xf32>
        %359 = arith.mulf %358, %355 : vector<1x1xf32>
        %360 = arith.subf %359, %132 : vector<1x1xf32>
        %cst_85 = arith.constant 3.000000e+00 : f32
        %361 = vector.broadcast %cst_85 : f32 to vector<1x1xf32>
        %362 = arith.mulf %361, %355 : vector<1x1xf32>
        %cst_86 = arith.constant 2.000000e+00 : f32
        %363 = vector.broadcast %cst_86 : f32 to vector<1x1xf32>
        %364 = arith.mulf %363, %107 : vector<1x1xf32>
        %365 = arith.subf %362, %364 : vector<1x1xf32>
        %366 = arith.mulf %365, %355 : vector<1x1xf32>
        %367 = arith.addf %366, %118 : vector<1x1xf32>
        %368 = math.absf %367 : vector<1x1xf32>
        %cst_87 = arith.constant 1.000000e-30 : f32
        %369 = vector.broadcast %cst_87 : f32 to vector<1x1xf32>
        %370 = arith.cmpf ogt, %368, %369 : vector<1x1xf32>
        %371 = arith.divf %360, %367 : vector<1x1xf32>
        %cst_88 = arith.constant 0.000000e+00 : f32
        %372 = vector.broadcast %cst_88 : f32 to vector<1x1xf32>
        %373 = arith.select %370, %371, %372 : vector<1x1xi1>, vector<1x1xf32>
        %374 = arith.subf %355, %373 : vector<1x1xf32>
        %375 = arith.subf %374, %107 : vector<1x1xf32>
        %376 = arith.mulf %375, %374 : vector<1x1xf32>
        %377 = arith.addf %376, %118 : vector<1x1xf32>
        %378 = arith.mulf %377, %374 : vector<1x1xf32>
        %379 = arith.subf %378, %132 : vector<1x1xf32>
        %cst_89 = arith.constant 3.000000e+00 : f32
        %380 = vector.broadcast %cst_89 : f32 to vector<1x1xf32>
        %381 = arith.mulf %380, %374 : vector<1x1xf32>
        %cst_90 = arith.constant 2.000000e+00 : f32
        %382 = vector.broadcast %cst_90 : f32 to vector<1x1xf32>
        %383 = arith.mulf %382, %107 : vector<1x1xf32>
        %384 = arith.subf %381, %383 : vector<1x1xf32>
        %385 = arith.mulf %384, %374 : vector<1x1xf32>
        %386 = arith.addf %385, %118 : vector<1x1xf32>
        %387 = math.absf %386 : vector<1x1xf32>
        %cst_91 = arith.constant 1.000000e-30 : f32
        %388 = vector.broadcast %cst_91 : f32 to vector<1x1xf32>
        %389 = arith.cmpf ogt, %387, %388 : vector<1x1xf32>
        %390 = arith.divf %379, %386 : vector<1x1xf32>
        %cst_92 = arith.constant 0.000000e+00 : f32
        %391 = vector.broadcast %cst_92 : f32 to vector<1x1xf32>
        %392 = arith.select %389, %390, %391 : vector<1x1xi1>, vector<1x1xf32>
        %393 = arith.subf %374, %392 : vector<1x1xf32>
        %394 = arith.subf %393, %107 : vector<1x1xf32>
        %395 = arith.mulf %394, %393 : vector<1x1xf32>
        %396 = arith.addf %395, %118 : vector<1x1xf32>
        %397 = arith.mulf %396, %393 : vector<1x1xf32>
        %398 = arith.subf %397, %132 : vector<1x1xf32>
        %cst_93 = arith.constant 3.000000e+00 : f32
        %399 = vector.broadcast %cst_93 : f32 to vector<1x1xf32>
        %400 = arith.mulf %399, %393 : vector<1x1xf32>
        %cst_94 = arith.constant 2.000000e+00 : f32
        %401 = vector.broadcast %cst_94 : f32 to vector<1x1xf32>
        %402 = arith.mulf %401, %107 : vector<1x1xf32>
        %403 = arith.subf %400, %402 : vector<1x1xf32>
        %404 = arith.mulf %403, %393 : vector<1x1xf32>
        %405 = arith.addf %404, %118 : vector<1x1xf32>
        %406 = math.absf %405 : vector<1x1xf32>
        %cst_95 = arith.constant 1.000000e-30 : f32
        %407 = vector.broadcast %cst_95 : f32 to vector<1x1xf32>
        %408 = arith.cmpf ogt, %406, %407 : vector<1x1xf32>
        %409 = arith.divf %398, %405 : vector<1x1xf32>
        %cst_96 = arith.constant 0.000000e+00 : f32
        %410 = vector.broadcast %cst_96 : f32 to vector<1x1xf32>
        %411 = arith.select %408, %409, %410 : vector<1x1xi1>, vector<1x1xf32>
        %412 = arith.subf %393, %411 : vector<1x1xf32>
        %413 = arith.subf %412, %107 : vector<1x1xf32>
        %414 = arith.mulf %413, %412 : vector<1x1xf32>
        %415 = arith.addf %414, %118 : vector<1x1xf32>
        %416 = arith.mulf %415, %412 : vector<1x1xf32>
        %417 = arith.subf %416, %132 : vector<1x1xf32>
        %cst_97 = arith.constant 3.000000e+00 : f32
        %418 = vector.broadcast %cst_97 : f32 to vector<1x1xf32>
        %419 = arith.mulf %418, %412 : vector<1x1xf32>
        %cst_98 = arith.constant 2.000000e+00 : f32
        %420 = vector.broadcast %cst_98 : f32 to vector<1x1xf32>
        %421 = arith.mulf %420, %107 : vector<1x1xf32>
        %422 = arith.subf %419, %421 : vector<1x1xf32>
        %423 = arith.mulf %422, %412 : vector<1x1xf32>
        %424 = arith.addf %423, %118 : vector<1x1xf32>
        %425 = math.absf %424 : vector<1x1xf32>
        %cst_99 = arith.constant 1.000000e-30 : f32
        %426 = vector.broadcast %cst_99 : f32 to vector<1x1xf32>
        %427 = arith.cmpf ogt, %425, %426 : vector<1x1xf32>
        %428 = arith.divf %417, %424 : vector<1x1xf32>
        %cst_100 = arith.constant 0.000000e+00 : f32
        %429 = vector.broadcast %cst_100 : f32 to vector<1x1xf32>
        %430 = arith.select %427, %428, %429 : vector<1x1xi1>, vector<1x1xf32>
        %431 = arith.subf %412, %430 : vector<1x1xf32>
        %432 = arith.subf %431, %107 : vector<1x1xf32>
        %433 = arith.mulf %432, %431 : vector<1x1xf32>
        %434 = arith.addf %433, %118 : vector<1x1xf32>
        %435 = arith.mulf %434, %431 : vector<1x1xf32>
        %436 = arith.subf %435, %132 : vector<1x1xf32>
        %cst_101 = arith.constant 3.000000e+00 : f32
        %437 = vector.broadcast %cst_101 : f32 to vector<1x1xf32>
        %438 = arith.mulf %437, %431 : vector<1x1xf32>
        %cst_102 = arith.constant 2.000000e+00 : f32
        %439 = vector.broadcast %cst_102 : f32 to vector<1x1xf32>
        %440 = arith.mulf %439, %107 : vector<1x1xf32>
        %441 = arith.subf %438, %440 : vector<1x1xf32>
        %442 = arith.mulf %441, %431 : vector<1x1xf32>
        %443 = arith.addf %442, %118 : vector<1x1xf32>
        %444 = math.absf %443 : vector<1x1xf32>
        %cst_103 = arith.constant 1.000000e-30 : f32
        %445 = vector.broadcast %cst_103 : f32 to vector<1x1xf32>
        %446 = arith.cmpf ogt, %444, %445 : vector<1x1xf32>
        %447 = arith.divf %436, %443 : vector<1x1xf32>
        %cst_104 = arith.constant 0.000000e+00 : f32
        %448 = vector.broadcast %cst_104 : f32 to vector<1x1xf32>
        %449 = arith.select %446, %447, %448 : vector<1x1xi1>, vector<1x1xf32>
        %450 = arith.subf %431, %449 : vector<1x1xf32>
        %451 = arith.subf %450, %107 : vector<1x1xf32>
        %452 = arith.mulf %451, %450 : vector<1x1xf32>
        %453 = arith.addf %452, %118 : vector<1x1xf32>
        %454 = arith.mulf %453, %450 : vector<1x1xf32>
        %455 = arith.subf %454, %132 : vector<1x1xf32>
        %cst_105 = arith.constant 3.000000e+00 : f32
        %456 = vector.broadcast %cst_105 : f32 to vector<1x1xf32>
        %457 = arith.mulf %456, %450 : vector<1x1xf32>
        %cst_106 = arith.constant 2.000000e+00 : f32
        %458 = vector.broadcast %cst_106 : f32 to vector<1x1xf32>
        %459 = arith.mulf %458, %107 : vector<1x1xf32>
        %460 = arith.subf %457, %459 : vector<1x1xf32>
        %461 = arith.mulf %460, %450 : vector<1x1xf32>
        %462 = arith.addf %461, %118 : vector<1x1xf32>
        %463 = math.absf %462 : vector<1x1xf32>
        %cst_107 = arith.constant 1.000000e-30 : f32
        %464 = vector.broadcast %cst_107 : f32 to vector<1x1xf32>
        %465 = arith.cmpf ogt, %463, %464 : vector<1x1xf32>
        %466 = arith.divf %455, %462 : vector<1x1xf32>
        %cst_108 = arith.constant 0.000000e+00 : f32
        %467 = vector.broadcast %cst_108 : f32 to vector<1x1xf32>
        %468 = arith.select %465, %466, %467 : vector<1x1xi1>, vector<1x1xf32>
        %469 = arith.subf %450, %468 : vector<1x1xf32>
        %470 = arith.subf %469, %107 : vector<1x1xf32>
        %471 = arith.mulf %470, %469 : vector<1x1xf32>
        %472 = arith.addf %471, %118 : vector<1x1xf32>
        %473 = arith.mulf %472, %469 : vector<1x1xf32>
        %474 = arith.subf %473, %132 : vector<1x1xf32>
        %cst_109 = arith.constant 3.000000e+00 : f32
        %475 = vector.broadcast %cst_109 : f32 to vector<1x1xf32>
        %476 = arith.mulf %475, %469 : vector<1x1xf32>
        %cst_110 = arith.constant 2.000000e+00 : f32
        %477 = vector.broadcast %cst_110 : f32 to vector<1x1xf32>
        %478 = arith.mulf %477, %107 : vector<1x1xf32>
        %479 = arith.subf %476, %478 : vector<1x1xf32>
        %480 = arith.mulf %479, %469 : vector<1x1xf32>
        %481 = arith.addf %480, %118 : vector<1x1xf32>
        %482 = math.absf %481 : vector<1x1xf32>
        %cst_111 = arith.constant 1.000000e-30 : f32
        %483 = vector.broadcast %cst_111 : f32 to vector<1x1xf32>
        %484 = arith.cmpf ogt, %482, %483 : vector<1x1xf32>
        %485 = arith.divf %474, %481 : vector<1x1xf32>
        %cst_112 = arith.constant 0.000000e+00 : f32
        %486 = vector.broadcast %cst_112 : f32 to vector<1x1xf32>
        %487 = arith.select %484, %485, %486 : vector<1x1xi1>, vector<1x1xf32>
        %488 = arith.subf %469, %487 : vector<1x1xf32>
        %489 = arith.subf %488, %107 : vector<1x1xf32>
        %490 = arith.mulf %489, %488 : vector<1x1xf32>
        %491 = arith.addf %490, %118 : vector<1x1xf32>
        %492 = arith.mulf %491, %488 : vector<1x1xf32>
        %493 = arith.subf %492, %132 : vector<1x1xf32>
        %cst_113 = arith.constant 3.000000e+00 : f32
        %494 = vector.broadcast %cst_113 : f32 to vector<1x1xf32>
        %495 = arith.mulf %494, %488 : vector<1x1xf32>
        %cst_114 = arith.constant 2.000000e+00 : f32
        %496 = vector.broadcast %cst_114 : f32 to vector<1x1xf32>
        %497 = arith.mulf %496, %107 : vector<1x1xf32>
        %498 = arith.subf %495, %497 : vector<1x1xf32>
        %499 = arith.mulf %498, %488 : vector<1x1xf32>
        %500 = arith.addf %499, %118 : vector<1x1xf32>
        %501 = math.absf %500 : vector<1x1xf32>
        %cst_115 = arith.constant 1.000000e-30 : f32
        %502 = vector.broadcast %cst_115 : f32 to vector<1x1xf32>
        %503 = arith.cmpf ogt, %501, %502 : vector<1x1xf32>
        %504 = arith.divf %493, %500 : vector<1x1xf32>
        %cst_116 = arith.constant 0.000000e+00 : f32
        %505 = vector.broadcast %cst_116 : f32 to vector<1x1xf32>
        %506 = arith.select %503, %504, %505 : vector<1x1xi1>, vector<1x1xf32>
        %507 = arith.subf %488, %506 : vector<1x1xf32>
        %508 = arith.subf %507, %107 : vector<1x1xf32>
        %509 = arith.mulf %508, %507 : vector<1x1xf32>
        %510 = arith.addf %509, %118 : vector<1x1xf32>
        %511 = arith.mulf %510, %507 : vector<1x1xf32>
        %512 = arith.subf %511, %132 : vector<1x1xf32>
        %cst_117 = arith.constant 3.000000e+00 : f32
        %513 = vector.broadcast %cst_117 : f32 to vector<1x1xf32>
        %514 = arith.mulf %513, %507 : vector<1x1xf32>
        %cst_118 = arith.constant 2.000000e+00 : f32
        %515 = vector.broadcast %cst_118 : f32 to vector<1x1xf32>
        %516 = arith.mulf %515, %107 : vector<1x1xf32>
        %517 = arith.subf %514, %516 : vector<1x1xf32>
        %518 = arith.mulf %517, %507 : vector<1x1xf32>
        %519 = arith.addf %518, %118 : vector<1x1xf32>
        %520 = math.absf %519 : vector<1x1xf32>
        %cst_119 = arith.constant 1.000000e-30 : f32
        %521 = vector.broadcast %cst_119 : f32 to vector<1x1xf32>
        %522 = arith.cmpf ogt, %520, %521 : vector<1x1xf32>
        %523 = arith.divf %512, %519 : vector<1x1xf32>
        %cst_120 = arith.constant 0.000000e+00 : f32
        %524 = vector.broadcast %cst_120 : f32 to vector<1x1xf32>
        %525 = arith.select %522, %523, %524 : vector<1x1xi1>, vector<1x1xf32>
        %526 = arith.subf %507, %525 : vector<1x1xf32>
        %527 = arith.subf %526, %107 : vector<1x1xf32>
        %528 = arith.mulf %527, %526 : vector<1x1xf32>
        %529 = arith.addf %528, %118 : vector<1x1xf32>
        %530 = arith.mulf %529, %526 : vector<1x1xf32>
        %531 = arith.subf %530, %132 : vector<1x1xf32>
        %cst_121 = arith.constant 3.000000e+00 : f32
        %532 = vector.broadcast %cst_121 : f32 to vector<1x1xf32>
        %533 = arith.mulf %532, %526 : vector<1x1xf32>
        %cst_122 = arith.constant 2.000000e+00 : f32
        %534 = vector.broadcast %cst_122 : f32 to vector<1x1xf32>
        %535 = arith.mulf %534, %107 : vector<1x1xf32>
        %536 = arith.subf %533, %535 : vector<1x1xf32>
        %537 = arith.mulf %536, %526 : vector<1x1xf32>
        %538 = arith.addf %537, %118 : vector<1x1xf32>
        %539 = math.absf %538 : vector<1x1xf32>
        %cst_123 = arith.constant 1.000000e-30 : f32
        %540 = vector.broadcast %cst_123 : f32 to vector<1x1xf32>
        %541 = arith.cmpf ogt, %539, %540 : vector<1x1xf32>
        %542 = arith.divf %531, %538 : vector<1x1xf32>
        %cst_124 = arith.constant 0.000000e+00 : f32
        %543 = vector.broadcast %cst_124 : f32 to vector<1x1xf32>
        %544 = arith.select %541, %542, %543 : vector<1x1xi1>, vector<1x1xf32>
        %545 = arith.subf %526, %544 : vector<1x1xf32>
        %546 = arith.subf %545, %107 : vector<1x1xf32>
        %547 = arith.mulf %546, %545 : vector<1x1xf32>
        %548 = arith.addf %547, %118 : vector<1x1xf32>
        %549 = arith.mulf %548, %545 : vector<1x1xf32>
        %550 = arith.subf %549, %132 : vector<1x1xf32>
        %cst_125 = arith.constant 3.000000e+00 : f32
        %551 = vector.broadcast %cst_125 : f32 to vector<1x1xf32>
        %552 = arith.mulf %551, %545 : vector<1x1xf32>
        %cst_126 = arith.constant 2.000000e+00 : f32
        %553 = vector.broadcast %cst_126 : f32 to vector<1x1xf32>
        %554 = arith.mulf %553, %107 : vector<1x1xf32>
        %555 = arith.subf %552, %554 : vector<1x1xf32>
        %556 = arith.mulf %555, %545 : vector<1x1xf32>
        %557 = arith.addf %556, %118 : vector<1x1xf32>
        %558 = math.absf %557 : vector<1x1xf32>
        %cst_127 = arith.constant 1.000000e-30 : f32
        %559 = vector.broadcast %cst_127 : f32 to vector<1x1xf32>
        %560 = arith.cmpf ogt, %558, %559 : vector<1x1xf32>
        %561 = arith.divf %550, %557 : vector<1x1xf32>
        %cst_128 = arith.constant 0.000000e+00 : f32
        %562 = vector.broadcast %cst_128 : f32 to vector<1x1xf32>
        %563 = arith.select %560, %561, %562 : vector<1x1xi1>, vector<1x1xf32>
        %564 = arith.subf %545, %563 : vector<1x1xf32>
        %565 = arith.subf %564, %107 : vector<1x1xf32>
        %566 = arith.mulf %565, %564 : vector<1x1xf32>
        %567 = arith.addf %566, %118 : vector<1x1xf32>
        %568 = arith.mulf %567, %564 : vector<1x1xf32>
        %569 = arith.subf %568, %132 : vector<1x1xf32>
        %cst_129 = arith.constant 3.000000e+00 : f32
        %570 = vector.broadcast %cst_129 : f32 to vector<1x1xf32>
        %571 = arith.mulf %570, %564 : vector<1x1xf32>
        %cst_130 = arith.constant 2.000000e+00 : f32
        %572 = vector.broadcast %cst_130 : f32 to vector<1x1xf32>
        %573 = arith.mulf %572, %107 : vector<1x1xf32>
        %574 = arith.subf %571, %573 : vector<1x1xf32>
        %575 = arith.mulf %574, %564 : vector<1x1xf32>
        %576 = arith.addf %575, %118 : vector<1x1xf32>
        %577 = math.absf %576 : vector<1x1xf32>
        %cst_131 = arith.constant 1.000000e-30 : f32
        %578 = vector.broadcast %cst_131 : f32 to vector<1x1xf32>
        %579 = arith.cmpf ogt, %577, %578 : vector<1x1xf32>
        %580 = arith.divf %569, %576 : vector<1x1xf32>
        %cst_132 = arith.constant 0.000000e+00 : f32
        %581 = vector.broadcast %cst_132 : f32 to vector<1x1xf32>
        %582 = arith.select %579, %580, %581 : vector<1x1xi1>, vector<1x1xf32>
        %583 = arith.subf %564, %582 : vector<1x1xf32>
        %584 = arith.subf %583, %107 : vector<1x1xf32>
        %585 = arith.mulf %584, %583 : vector<1x1xf32>
        %586 = arith.addf %585, %118 : vector<1x1xf32>
        %587 = arith.mulf %586, %583 : vector<1x1xf32>
        %588 = arith.subf %587, %132 : vector<1x1xf32>
        %cst_133 = arith.constant 3.000000e+00 : f32
        %589 = vector.broadcast %cst_133 : f32 to vector<1x1xf32>
        %590 = arith.mulf %589, %583 : vector<1x1xf32>
        %cst_134 = arith.constant 2.000000e+00 : f32
        %591 = vector.broadcast %cst_134 : f32 to vector<1x1xf32>
        %592 = arith.mulf %591, %107 : vector<1x1xf32>
        %593 = arith.subf %590, %592 : vector<1x1xf32>
        %594 = arith.mulf %593, %583 : vector<1x1xf32>
        %595 = arith.addf %594, %118 : vector<1x1xf32>
        %596 = math.absf %595 : vector<1x1xf32>
        %cst_135 = arith.constant 1.000000e-30 : f32
        %597 = vector.broadcast %cst_135 : f32 to vector<1x1xf32>
        %598 = arith.cmpf ogt, %596, %597 : vector<1x1xf32>
        %599 = arith.divf %588, %595 : vector<1x1xf32>
        %cst_136 = arith.constant 0.000000e+00 : f32
        %600 = vector.broadcast %cst_136 : f32 to vector<1x1xf32>
        %601 = arith.select %598, %599, %600 : vector<1x1xi1>, vector<1x1xf32>
        %602 = arith.subf %583, %601 : vector<1x1xf32>
        %603 = arith.subf %100, %602 : vector<1x1xf32>
        %604 = arith.subf %101, %602 : vector<1x1xf32>
        %605 = arith.subf %102, %602 : vector<1x1xf32>
        %606 = arith.mulf %103, %104 : vector<1x1xf32>
        %607 = arith.mulf %105, %604 : vector<1x1xf32>
        %608 = arith.subf %606, %607 : vector<1x1xf32>
        %609 = arith.mulf %105, %103 : vector<1x1xf32>
        %610 = arith.mulf %603, %104 : vector<1x1xf32>
        %611 = arith.subf %609, %610 : vector<1x1xf32>
        %612 = arith.mulf %603, %604 : vector<1x1xf32>
        %613 = arith.mulf %103, %103 : vector<1x1xf32>
        %614 = arith.subf %612, %613 : vector<1x1xf32>
        %615 = arith.mulf %103, %605 : vector<1x1xf32>
        %616 = arith.mulf %105, %104 : vector<1x1xf32>
        %617 = arith.subf %615, %616 : vector<1x1xf32>
        %618 = arith.mulf %105, %105 : vector<1x1xf32>
        %619 = arith.mulf %603, %605 : vector<1x1xf32>
        %620 = arith.subf %618, %619 : vector<1x1xf32>
        %621 = arith.mulf %603, %104 : vector<1x1xf32>
        %622 = arith.mulf %103, %105 : vector<1x1xf32>
        %623 = arith.subf %621, %622 : vector<1x1xf32>
        %624 = arith.mulf %604, %605 : vector<1x1xf32>
        %625 = arith.mulf %104, %104 : vector<1x1xf32>
        %626 = arith.subf %624, %625 : vector<1x1xf32>
        %627 = arith.mulf %104, %105 : vector<1x1xf32>
        %628 = arith.mulf %103, %605 : vector<1x1xf32>
        %629 = arith.subf %627, %628 : vector<1x1xf32>
        %630 = arith.mulf %103, %104 : vector<1x1xf32>
        %631 = arith.mulf %604, %105 : vector<1x1xf32>
        %632 = arith.subf %630, %631 : vector<1x1xf32>
        %633 = arith.mulf %608, %608 : vector<1x1xf32>
        %634 = arith.mulf %611, %611 : vector<1x1xf32>
        %635 = arith.addf %633, %634 : vector<1x1xf32>
        %636 = arith.mulf %614, %614 : vector<1x1xf32>
        %637 = arith.addf %635, %636 : vector<1x1xf32>
        %638 = arith.mulf %617, %617 : vector<1x1xf32>
        %639 = arith.mulf %620, %620 : vector<1x1xf32>
        %640 = arith.addf %638, %639 : vector<1x1xf32>
        %641 = arith.mulf %623, %623 : vector<1x1xf32>
        %642 = arith.addf %640, %641 : vector<1x1xf32>
        %643 = arith.mulf %626, %626 : vector<1x1xf32>
        %644 = arith.mulf %629, %629 : vector<1x1xf32>
        %645 = arith.addf %643, %644 : vector<1x1xf32>
        %646 = arith.mulf %632, %632 : vector<1x1xf32>
        %647 = arith.addf %645, %646 : vector<1x1xf32>
        %648 = arith.cmpf oge, %637, %642 : vector<1x1xf32>
        %649 = arith.cmpf oge, %637, %647 : vector<1x1xf32>
        %650 = arith.andi %648, %649 : vector<1x1xi1>
        %cst_137 = arith.constant dense<true> : vector<1x1xi1>
        %651 = arith.xori %650, %cst_137 : vector<1x1xi1>
        %652 = arith.cmpf oge, %642, %647 : vector<1x1xf32>
        %653 = arith.andi %651, %652 : vector<1x1xi1>
        %654 = arith.select %653, %617, %626 : vector<1x1xi1>, vector<1x1xf32>
        %655 = arith.select %650, %608, %654 : vector<1x1xi1>, vector<1x1xf32>
        %656 = arith.select %653, %620, %629 : vector<1x1xi1>, vector<1x1xf32>
        %657 = arith.select %650, %611, %656 : vector<1x1xi1>, vector<1x1xf32>
        %658 = arith.select %653, %623, %632 : vector<1x1xi1>, vector<1x1xf32>
        %659 = arith.select %650, %614, %658 : vector<1x1xi1>, vector<1x1xf32>
        %660 = arith.maximumf %637, %642 : vector<1x1xf32>
        %661 = arith.maximumf %660, %647 : vector<1x1xf32>
        %cst_138 = arith.constant 1.000000e-24 : f32
        %662 = vector.broadcast %cst_138 : f32 to vector<1x1xf32>
        %663 = arith.cmpf olt, %661, %662 : vector<1x1xf32>
        %cst_139 = arith.constant 0.000000e+00 : f32
        %664 = vector.broadcast %cst_139 : f32 to vector<1x1xf32>
        %665 = arith.select %663, %664, %655 : vector<1x1xi1>, vector<1x1xf32>
        %cst_140 = arith.constant 0.000000e+00 : f32
        %666 = vector.broadcast %cst_140 : f32 to vector<1x1xf32>
        %667 = arith.select %663, %666, %657 : vector<1x1xi1>, vector<1x1xf32>
        %cst_141 = arith.constant 1.000000e+00 : f32
        %668 = vector.broadcast %cst_141 : f32 to vector<1x1xf32>
        %669 = arith.select %663, %668, %659 : vector<1x1xi1>, vector<1x1xf32>
        %670 = arith.mulf %665, %665 : vector<1x1xf32>
        %671 = arith.mulf %667, %667 : vector<1x1xf32>
        %672 = arith.addf %670, %671 : vector<1x1xf32>
        %673 = arith.mulf %669, %669 : vector<1x1xf32>
        %674 = arith.addf %672, %673 : vector<1x1xf32>
        %cst_142 = arith.constant 1.000000e-30 : f32
        %675 = vector.broadcast %cst_142 : f32 to vector<1x1xf32>
        %676 = arith.maximumf %674, %675 : vector<1x1xf32>
        %677 = math.rsqrt %676 : vector<1x1xf32>
        %678 = arith.mulf %665, %677 : vector<1x1xf32>
        %679 = arith.mulf %667, %677 : vector<1x1xf32>
        %680 = arith.mulf %669, %677 : vector<1x1xf32>
        %c0_143 = arith.constant 0 : index
        %c0_144 = arith.constant 0 : index
        %681 = vector.load %arg2[%c0_143, %c0_144] : memref<1x4xf32, #tpu.memory_space<vmem>>, vector<1x1xf32>
        %c0_145 = arith.constant 0 : index
        %c1_146 = arith.constant 1 : index
        %682 = vector.load %arg2[%c0_145, %c1_146] : memref<1x4xf32, #tpu.memory_space<vmem>>, vector<1x1xf32>
        %c0_147 = arith.constant 0 : index
        %c2_148 = arith.constant 2 : index
        %683 = vector.load %arg2[%c0_147, %c2_148] : memref<1x4xf32, #tpu.memory_space<vmem>>, vector<1x1xf32>
        %c0_149 = arith.constant 0 : index
        %c3 = arith.constant 3 : index
        %684 = vector.load %arg2[%c0_149, %c3] : memref<1x4xf32, #tpu.memory_space<vmem>>, vector<1x1xf32>
        %685 = arith.mulf %681, %683 : vector<1x1xf32>
        %686 = arith.mulf %684, %682 : vector<1x1xf32>
        %687 = arith.addf %685, %686 : vector<1x1xf32>
        %cst_150 = arith.constant 2.000000e+00 : f32
        %688 = vector.broadcast %cst_150 : f32 to vector<1x1xf32>
        %689 = arith.mulf %688, %687 : vector<1x1xf32>
        %690 = arith.mulf %682, %683 : vector<1x1xf32>
        %691 = arith.mulf %684, %681 : vector<1x1xf32>
        %692 = arith.subf %690, %691 : vector<1x1xf32>
        %cst_151 = arith.constant 2.000000e+00 : f32
        %693 = vector.broadcast %cst_151 : f32 to vector<1x1xf32>
        %694 = arith.mulf %693, %692 : vector<1x1xf32>
        %695 = arith.mulf %681, %681 : vector<1x1xf32>
        %696 = arith.mulf %682, %682 : vector<1x1xf32>
        %697 = arith.addf %695, %696 : vector<1x1xf32>
        %cst_152 = arith.constant 2.000000e+00 : f32
        %698 = vector.broadcast %cst_152 : f32 to vector<1x1xf32>
        %699 = arith.mulf %698, %697 : vector<1x1xf32>
        %cst_153 = arith.constant 1.000000e+00 : f32
        %700 = vector.broadcast %cst_153 : f32 to vector<1x1xf32>
        %701 = arith.subf %700, %699 : vector<1x1xf32>
        %702 = arith.mulf %689, %678 : vector<1x1xf32>
        %703 = arith.mulf %694, %679 : vector<1x1xf32>
        %704 = arith.addf %702, %703 : vector<1x1xf32>
        %705 = arith.mulf %701, %680 : vector<1x1xf32>
        %706 = arith.addf %704, %705 : vector<1x1xf32>
        %cst_154 = arith.constant 0.000000e+00 : f32
        %707 = vector.broadcast %cst_154 : f32 to vector<1x1xf32>
        %708 = arith.cmpf olt, %706, %707 : vector<1x1xf32>
        %cst_155 = arith.constant -1.000000e+00 : f32
        %cst_156 = arith.constant 1.000000e+00 : f32
        %709 = vector.broadcast %cst_155 : f32 to vector<1x1xf32>
        %710 = vector.broadcast %cst_156 : f32 to vector<1x1xf32>
        %711 = arith.select %708, %709, %710 : vector<1x1xi1>, vector<1x1xf32>
        %712 = arith.mulf %678, %711 : vector<1x1xf32>
        %713 = arith.mulf %679, %711 : vector<1x1xf32>
        %714 = arith.mulf %680, %711 : vector<1x1xf32>
        %c0_157 = arith.constant 0 : index
        %c0_158 = arith.constant 0 : index
        %715 = vector.load %arg3[%c0_157, %c0_158] : memref<1x3xf32, #tpu.memory_space<vmem>>, vector<1x1xf32>
        %c0_159 = arith.constant 0 : index
        %c1_160 = arith.constant 1 : index
        %716 = vector.load %arg3[%c0_159, %c1_160] : memref<1x3xf32, #tpu.memory_space<vmem>>, vector<1x1xf32>
        %c0_161 = arith.constant 0 : index
        %c2_162 = arith.constant 2 : index
        %717 = vector.load %arg3[%c0_161, %c2_162] : memref<1x3xf32, #tpu.memory_space<vmem>>, vector<1x1xf32>
        %718 = arith.mulf %716, %714 : vector<1x1xf32>
        %719 = arith.mulf %717, %713 : vector<1x1xf32>
        %720 = arith.subf %718, %719 : vector<1x1xf32>
        %721 = arith.mulf %717, %712 : vector<1x1xf32>
        %722 = arith.mulf %715, %714 : vector<1x1xf32>
        %723 = arith.subf %721, %722 : vector<1x1xf32>
        %724 = arith.mulf %715, %713 : vector<1x1xf32>
        %725 = arith.mulf %716, %712 : vector<1x1xf32>
        %726 = arith.subf %724, %725 : vector<1x1xf32>
        %727 = arith.mulf %723, %717 : vector<1x1xf32>
        %728 = arith.mulf %726, %716 : vector<1x1xf32>
        %729 = arith.subf %727, %728 : vector<1x1xf32>
        %730 = arith.mulf %726, %715 : vector<1x1xf32>
        %731 = arith.mulf %720, %717 : vector<1x1xf32>
        %732 = arith.subf %730, %731 : vector<1x1xf32>
        %733 = arith.mulf %720, %716 : vector<1x1xf32>
        %734 = arith.mulf %723, %715 : vector<1x1xf32>
        %735 = arith.subf %733, %734 : vector<1x1xf32>
        %c0_163 = arith.constant 0 : index
        %c0_164 = arith.constant 0 : index
        %736 = vector.load %arg7[%c0_163, %c0_164] : memref<3x1xf32, #tpu.memory_space<vmem>>, vector<1x1xf32>
        %c1_165 = arith.constant 1 : index
        %c0_166 = arith.constant 0 : index
        %737 = vector.load %arg7[%c1_165, %c0_166] : memref<3x1xf32, #tpu.memory_space<vmem>>, vector<1x1xf32>
        %c2_167 = arith.constant 2 : index
        %c0_168 = arith.constant 0 : index
        %738 = vector.load %arg7[%c2_167, %c0_168] : memref<3x1xf32, #tpu.memory_space<vmem>>, vector<1x1xf32>
        %c0_169 = arith.constant 0 : index
        %c0_170 = arith.constant 0 : index
        %739 = vector.load %arg8[%c0_169, %c0_170] : memref<3x4xf32, #tpu.memory_space<vmem>>, vector<1x1xf32>
        tpu.vector_store %arg8[%c0_169, %c0_170], %720 {strides = array<i32>} : memref<3x4xf32, #tpu.memory_space<vmem>>, vector<1x1xf32>,
        %c0_171 = arith.constant 0 : index
        %c1_172 = arith.constant 1 : index
        %740 = vector.load %arg8[%c0_171, %c1_172] : memref<3x4xf32, #tpu.memory_space<vmem>>, vector<1x1xf32>
        tpu.vector_store %arg8[%c0_171, %c1_172], %723 {strides = array<i32>} : memref<3x4xf32, #tpu.memory_space<vmem>>, vector<1x1xf32>,
        %c0_173 = arith.constant 0 : index
        %c2_174 = arith.constant 2 : index
        %741 = vector.load %arg8[%c0_173, %c2_174] : memref<3x4xf32, #tpu.memory_space<vmem>>, vector<1x1xf32>
        tpu.vector_store %arg8[%c0_173, %c2_174], %726 {strides = array<i32>} : memref<3x4xf32, #tpu.memory_space<vmem>>, vector<1x1xf32>,
        %742 = arith.mulf %720, %736 : vector<1x1xf32>
        %743 = arith.mulf %723, %737 : vector<1x1xf32>
        %744 = arith.addf %742, %743 : vector<1x1xf32>
        %745 = arith.mulf %726, %738 : vector<1x1xf32>
        %746 = arith.addf %744, %745 : vector<1x1xf32>
        %c0_175 = arith.constant 0 : index
        %c3_176 = arith.constant 3 : index
        %747 = vector.load %arg8[%c0_175, %c3_176] : memref<3x4xf32, #tpu.memory_space<vmem>>, vector<1x1xf32>
        tpu.vector_store %arg8[%c0_175, %c3_176], %746 {strides = array<i32>} : memref<3x4xf32, #tpu.memory_space<vmem>>, vector<1x1xf32>,
        %c1_177 = arith.constant 1 : index
        %c0_178 = arith.constant 0 : index
        %748 = vector.load %arg8[%c1_177, %c0_178] : memref<3x4xf32, #tpu.memory_space<vmem>>, vector<1x1xf32>
        tpu.vector_store %arg8[%c1_177, %c0_178], %715 {strides = array<i32>} : memref<3x4xf32, #tpu.memory_space<vmem>>, vector<1x1xf32>,
        %c1_179 = arith.constant 1 : index
        %c1_180 = arith.constant 1 : index
        %749 = vector.load %arg8[%c1_179, %c1_180] : memref<3x4xf32, #tpu.memory_space<vmem>>, vector<1x1xf32>
        tpu.vector_store %arg8[%c1_179, %c1_180], %716 {strides = array<i32>} : memref<3x4xf32, #tpu.memory_space<vmem>>, vector<1x1xf32>,
        %c1_181 = arith.constant 1 : index
        %c2_182 = arith.constant 2 : index
        %750 = vector.load %arg8[%c1_181, %c2_182] : memref<3x4xf32, #tpu.memory_space<vmem>>, vector<1x1xf32>
        tpu.vector_store %arg8[%c1_181, %c2_182], %717 {strides = array<i32>} : memref<3x4xf32, #tpu.memory_space<vmem>>, vector<1x1xf32>,
        %751 = arith.mulf %715, %736 : vector<1x1xf32>
        %752 = arith.mulf %716, %737 : vector<1x1xf32>
        %753 = arith.addf %751, %752 : vector<1x1xf32>
        %754 = arith.mulf %717, %738 : vector<1x1xf32>
        %755 = arith.addf %753, %754 : vector<1x1xf32>
        %c1_183 = arith.constant 1 : index
        %c3_184 = arith.constant 3 : index
        %756 = vector.load %arg8[%c1_183, %c3_184] : memref<3x4xf32, #tpu.memory_space<vmem>>, vector<1x1xf32>
        tpu.vector_store %arg8[%c1_183, %c3_184], %755 {strides = array<i32>} : memref<3x4xf32, #tpu.memory_space<vmem>>, vector<1x1xf32>,
        %c2_185 = arith.constant 2 : index
        %c0_186 = arith.constant 0 : index
        %757 = vector.load %arg8[%c2_185, %c0_186] : memref<3x4xf32, #tpu.memory_space<vmem>>, vector<1x1xf32>
        tpu.vector_store %arg8[%c2_185, %c0_186], %729 {strides = array<i32>} : memref<3x4xf32, #tpu.memory_space<vmem>>, vector<1x1xf32>,
        %c2_187 = arith.constant 2 : index
        %c1_188 = arith.constant 1 : index
        %758 = vector.load %arg8[%c2_187, %c1_188] : memref<3x4xf32, #tpu.memory_space<vmem>>, vector<1x1xf32>
        tpu.vector_store %arg8[%c2_187, %c1_188], %732 {strides = array<i32>} : memref<3x4xf32, #tpu.memory_space<vmem>>, vector<1x1xf32>,
        %c2_189 = arith.constant 2 : index
        %c2_190 = arith.constant 2 : index
        %759 = vector.load %arg8[%c2_189, %c2_190] : memref<3x4xf32, #tpu.memory_space<vmem>>, vector<1x1xf32>
        tpu.vector_store %arg8[%c2_189, %c2_190], %735 {strides = array<i32>} : memref<3x4xf32, #tpu.memory_space<vmem>>, vector<1x1xf32>,
        %760 = arith.mulf %729, %736 : vector<1x1xf32>
        %761 = arith.mulf %732, %737 : vector<1x1xf32>
        %762 = arith.addf %760, %761 : vector<1x1xf32>
        %763 = arith.mulf %735, %738 : vector<1x1xf32>
        %764 = arith.addf %762, %763 : vector<1x1xf32>
        %c2_191 = arith.constant 2 : index
        %c3_192 = arith.constant 3 : index
        %765 = vector.load %arg8[%c2_191, %c3_192] : memref<3x4xf32, #tpu.memory_space<vmem>>, vector<1x1xf32>
        tpu.vector_store %arg8[%c2_191, %c3_192], %764 {strides = array<i32>} : memref<3x4xf32, #tpu.memory_space<vmem>>, vector<1x1xf32>,
      } else {
      }
    } else {
    }
    %c1_i32 = arith.constant 1 : i32
    %3 = arith.cmpi eq, %arg0, %c1_i32 : i32
    %4 = arith.extui %3 : i1 to i32
    %c0_i32_1 = arith.constant 0 : i32
    %5 = arith.cmpi ne, %4, %c0_i32_1 : i32
    scf.if %5 {
      %c0 = arith.constant 0 : index
      %c0_2 = arith.constant 0 : index
      %6 = vector.load %arg4[%c0, %c0_2] : memref<3x256xf32, #tpu.memory_space<vmem>>, vector<3x256xf32>
      %c0_3 = arith.constant 0 : index
      %c0_4 = arith.constant 0 : index
      %7 = vector.load %arg8[%c0_3, %c0_4] : memref<3x4xf32, #tpu.memory_space<vmem>>, vector<3x4xf32>
      %8 = vector.extract_strided_slice %7 {offsets = [0, 0], sizes = [3, 1], strides = [1, 1]} : vector<3x4xf32> to vector<3x1xf32>
      %9 = vector.extract_strided_slice %6 {offsets = [0, 0], sizes = [1, 256], strides = [1, 1]} : vector<3x256xf32> to vector<1x256xf32>
      %10 = vector.broadcast %8 : vector<3x1xf32> to vector<3x256xf32>
      %11 = vector.broadcast %9 : vector<1x256xf32> to vector<3x256xf32>
      %12 = arith.mulf %10, %11 : vector<3x256xf32>
      %13 = vector.extract_strided_slice %7 {offsets = [0, 1], sizes = [3, 1], strides = [1, 1]} : vector<3x4xf32> to vector<3x1xf32>
      %14 = vector.extract_strided_slice %6 {offsets = [1, 0], sizes = [1, 256], strides = [1, 1]} : vector<3x256xf32> to vector<1x256xf32>
      %15 = vector.broadcast %13 : vector<3x1xf32> to vector<3x256xf32>
      %16 = vector.broadcast %14 : vector<1x256xf32> to vector<3x256xf32>
      %17 = arith.mulf %15, %16 : vector<3x256xf32>
      %18 = arith.addf %12, %17 : vector<3x256xf32>
      %19 = vector.extract_strided_slice %7 {offsets = [0, 2], sizes = [3, 1], strides = [1, 1]} : vector<3x4xf32> to vector<3x1xf32>
      %20 = vector.extract_strided_slice %6 {offsets = [2, 0], sizes = [1, 256], strides = [1, 1]} : vector<3x256xf32> to vector<1x256xf32>
      %21 = vector.broadcast %19 : vector<3x1xf32> to vector<3x256xf32>
      %22 = vector.broadcast %20 : vector<1x256xf32> to vector<3x256xf32>
      %23 = arith.mulf %21, %22 : vector<3x256xf32>
      %24 = arith.addf %18, %23 : vector<3x256xf32>
      %25 = vector.extract_strided_slice %7 {offsets = [0, 3], sizes = [3, 1], strides = [1, 1]} : vector<3x4xf32> to vector<3x1xf32>
      %26 = vector.broadcast %25 : vector<3x1xf32> to vector<3x256xf32>
      %27 = arith.subf %24, %26 : vector<3x256xf32>
      %c0_5 = arith.constant 0 : index
      %c0_6 = arith.constant 0 : index
      %28 = vector.load %arg5[%c0_5, %c0_6] : memref<3x256xf32, #tpu.memory_space<vmem>>, vector<3x256xf32>
      tpu.vector_store %arg5[%c0_5, %c0_6], %27 {strides = array<i32>} : memref<3x256xf32, #tpu.memory_space<vmem>>, vector<3x256xf32>,
    } else {
    }
    return
  }
  func.func @transform_0(%arg0: i32, %arg1: i32) -> (i32, i32) {
    %c0_i32 = arith.constant 0 : i32
    %c0_i32_0 = arith.constant 0 : i32
    %c0_i32_1 = arith.constant 0 : i32
    return %c0_i32, %c0_i32_0 : i32, i32
  }
  func.func @transform_1(%arg0: i32, %arg1: i32) -> (i32, i32) {
    %c0_i32 = arith.constant 0 : i32
    %c0_i32_0 = arith.constant 0 : i32
    %c0_i32_1 = arith.constant 0 : i32
    return %c0_i32, %c0_i32_0 : i32, i32
  }
  func.func @transform_2(%arg0: i32, %arg1: i32) -> (i32, i32) {
    %c0_i32 = arith.constant 0 : i32
    %c0_i32_0 = arith.constant 0 : i32
    return %c0_i32, %arg1 : i32, i32
  }
  func.func @transform_3(%arg0: i32, %arg1: i32) -> (i32, i32) {
    %0 = arith.muli %arg1, %arg0 : i32
    %c0_i32 = arith.constant 0 : i32
    %c0_i32_0 = arith.constant 0 : i32
    return %c0_i32, %0 : i32, i32
  }
}

</mosaic_0001>

<llo_original>
// kernel: _forward_impl.1
$region0: #{_forward_impl.1}
  #allocation0 [shape = 'u32[]', space=smem, size = 0x4, offset = 0x4, fixed_abs, tag = 'smem constant byte address 0x4 - core index']
  #allocation1 [shape = 'u32[144,128]{1,0:T(1,128)}', space=vmem, size = 0x12000, scoped, tag = 'internal scratch']
  #allocation2 [shape = 'f32[3,3]{1,0:T(4,128)}', space=vmem, size = 0x800, scoped, tag = 'scratch operand']
  #allocation3 [shape = 'f32[3,1]{1,0:T(4,128)}', space=vmem, size = 0x800, scoped, tag = 'scratch operand']
  #allocation4 [shape = 'f32[3,4]{1,0:T(4,128)}', space=vmem, size = 0x800, scoped, tag = 'scratch operand']
  %s0 = inlined_call_operand.vmem [shape: f32[1,4], index: 0, kind: input, shape index: {}]
  %s1 = inlined_call_operand.vmem [shape: f32[1,3], index: 1, kind: input, shape index: {}]
  %s2 = inlined_call_operand.vmem [shape: f32[3,256], index: 2, kind: input, shape index: {}]
  %s3 = inlined_call_operand.vmem [shape: f32[3,256], index: 3, kind: output, shape index: {}]
  %s4 = sld [smem:[#allocation0]]
  $region61: #{_forward_impl.1} parent=0
    _
  %s6 = ssub.s32 1, %s4
  %s7 = scalar_select 0, %s6, %s4
  loop: start=0, step=1, limit=4
  $region2: #{_forward_impl.1} parent=0 // loop_pre_header
    _
  $region3: #{_forward_impl.1} parent=0 // loop_header
    %s9 = sphi 0, %s13
    %p10 = scmp.ge.s32.totalorder %s9, 4
    %s16 = sphi 0, %s28
    %s17 = sphi 0, %s24
    %s18 = sphi 0, %s16
    %s19 = sphi 0, %s17
    %s20 = sphi 0, %s18
    %s21 = sphi 0, %s19
    %s29 = sphi 0, %s29
    %s31 = sphi 0, %s29
    %s32 = sphi 0, %s31
    %s46 = sphi 0, %s32
    %s50 = sphi 0, %s50
    %s52 = sphi 0, %s50
    %s53 = sphi 0, %s52
    %s67 = sphi 0, %s53
    %s73 = sphi 0, %s75
    %s76 = sphi 0, %s73
    %s77 = sphi 0, %s76
    %s93 = sphi 0, %s77
    %s101 = sphi 0, %s103
    %s104 = sphi 0, %s101
    %s105 = sphi 0, %s104
    %s121 = sphi 0, %s105
  $region4: #{_forward_impl.1} parent=0 // loop_header_branch
    %12 = sbr.rel (%p10) target = $region8
  $region5: #{_forward_impl.1} parent=0 // loop_body
    %s14 = ssub.s32 %s9, 1
    %s15 = ssub.s32 %s9, 2
    %s22 = sadd.s32 1, %s17
    %p23 = scmp.ge.s32.totalorder %s22, 1
    %s24 = scalar_select %p23, 0, %s22
    %s25 = sadd.s32 1, %s16
    %s26 = scalar_select %p23, %s25, %s16
    %p27 = scmp.ge.s32.totalorder %s26, 2
    %s28 = scalar_select %p27, 0, %s26
    %s30 = sadd.s32 %s29, 1
    %p33 = scmp.eq.s32.totalorder %s9, 1
    %p34 = scmp.ne.s32.totalorder %s29, %s31
    %p35 = scmp.eq.s32.totalorder %s9, 0
    %p36 = por %p34, %p35
    %p37 = scmp.ne.s32.totalorder %s29, %s31
    %p38 = scmp.eq.s32.totalorder %s14, 1
    %p39 = por %p37, %p38
    %p40 = scmp.ne.s32.totalorder %s31, %s32
    %p41 = scmp.eq.s32.totalorder %s14, 0
    %p42 = por %p40, %p41
    %p43 = scmp.ne.s32.totalorder %s31, %s32
    %p44 = scmp.eq.s32.totalorder %s15, 1
    %p45 = por %p43, %p44
    %p47 = scmp.ne.s32.totalorder %s32, %s46
    %p48 = scmp.eq.s32.totalorder %s15, 0
    %p49 = por %p47, %p48
    %s51 = sadd.s32 %s50, 1
    %p54 = scmp.eq.s32.totalorder %s9, 1
    %p55 = scmp.ne.s32.totalorder %s50, %s52
    %p56 = scmp.eq.s32.totalorder %s9, 0
    %p57 = por %p55, %p56
    %p58 = scmp.ne.s32.totalorder %s50, %s52
    %p59 = scmp.eq.s32.totalorder %s14, 1
    %p60 = por %p58, %p59
    %p61 = scmp.ne.s32.totalorder %s52, %s53
    %p62 = scmp.eq.s32.totalorder %s14, 0
    %p63 = por %p61, %p62
    %p64 = scmp.ne.s32.totalorder %s52, %s53
    %p65 = scmp.eq.s32.totalorder %s15, 1
    %p66 = por %p64, %p65
    %p68 = scmp.ne.s32.totalorder %s53, %s67
    %p69 = scmp.eq.s32.totalorder %s15, 0
    %p70 = por %p68, %p69
    %s71 = ssub.s32 %s17, %s24
    %p72 = scmp.eq.s32.totalorder %s71, 0
    %s74 = sadd.s32 %s73, 1
    %s75 = scalar_select %p72, %s73, %s74
    %p78 = pneg %p72
    %p79 = scmp.eq.s32.totalorder %s9, 1
    %p80 = por %p78, %p79
    %p81 = scmp.ne.s32.totalorder %s73, %s76
    %p82 = scmp.eq.s32.totalorder %s9, 0
    %p83 = por %p81, %p82
    %p84 = scmp.ne.s32.totalorder %s73, %s76
    %p85 = scmp.eq.s32.totalorder %s14, 1
    %p86 = por %p84, %p85
    %p87 = scmp.ne.s32.totalorder %s76, %s77
    %p88 = scmp.eq.s32.totalorder %s14, 0
    %p89 = por %p87, %p88
    %p90 = scmp.ne.s32.totalorder %s76, %s77
    %p91 = scmp.eq.s32.totalorder %s15, 1
    %p92 = por %p90, %p91
    %p94 = scmp.ne.s32.totalorder %s77, %s93
    %p95 = scmp.eq.s32.totalorder %s15, 0
    %p96 = por %p94, %p95
    %s97 = smul.u32 %s17, %s16
    %s98 = smul.u32 %s24, %s28
    %s99 = ssub.s32 %s97, %s98
    %p100 = scmp.eq.s32.totalorder %s99, 0
    %s102 = sadd.s32 %s101, 1
    %s103 = scalar_select %p100, %s101, %s102
    %p106 = pneg %p100
    %p107 = scmp.eq.s32.totalorder %s9, 1
    %p108 = por %p106, %p107
    %p109 = scmp.ne.s32.totalorder %s101, %s104
    %p110 = scmp.eq.s32.totalorder %s9, 0
    %p111 = por %p109, %p110
    %p112 = scmp.ne.s32.totalorder %s101, %s104
    %p113 = scmp.eq.s32.totalorder %s14, 1
    %p114 = por %p112, %p113
    %p115 = scmp.ne.s32.totalorder %s104, %s105
    %p116 = scmp.eq.s32.totalorder %s14, 0
    %p117 = por %p115, %p116
    %p118 = scmp.ne.s32.totalorder %s104, %s105
    %p119 = scmp.eq.s32.totalorder %s15, 1
    %p120 = por %p118, %p119
    %p122 = scmp.ne.s32.totalorder %s105, %s121
    %p123 = scmp.eq.s32.totalorder %s15, 0
    %p124 = por %p122, %p123
    %p125 = scmp.le.s32.totalorder 1, %s9
    %p126 = scmp.lt.s32.totalorder %s9, 3
    %p127 = pnand %p125, %p126
    %p128 = pneg %p127
    // Predicated region
    $region9: #{_forward_impl.1} parent=5 // pred_check
      _
    $region10: #{_forward_impl.1} parent=5 // pred_check_branch
      %130 = sbr.rel (%p127) target = $region12
    $region11: #{_forward_impl.1} parent=5 // pred_region
      %s131 = ssub.s32 %s9, 1
      // Predicated region
      $region13: #{_forward_impl.1} parent=11 // pred_check
        %p132 = pneg %p42
      $region14: #{_forward_impl.1} parent=11 // pred_check_branch
        %134 = sbr.rel (%p132) target = $region16
      $region15: #{_forward_impl.1} parent=11 // pred_region
        _
      $region16: #{_forward_impl.1} parent=11 // pred_fallthru
        _
      // Predicated region
      $region17: #{_forward_impl.1} parent=11 // pred_check
        %p135 = pneg %p63
      $region18: #{_forward_impl.1} parent=11 // pred_check_branch
        %137 = sbr.rel (%p135) target = $region20
      $region19: #{_forward_impl.1} parent=11 // pred_region
        _
      $region20: #{_forward_impl.1} parent=11 // pred_fallthru
        _
      // Predicated region
      $region21: #{_forward_impl.1} parent=11 // pred_check
        %p138 = pneg %p89
      $region22: #{_forward_impl.1} parent=11 // pred_check_branch
        %140 = sbr.rel (%p138) target = $region24
      $region23: #{_forward_impl.1} parent=11 // pred_region
        %s141 = smul.u32 2, %s19
        %p142 = scmp.lt.s32.totalorder %s141, 1
        %s143 = scalar_select %p142, %s141, 1
        %s144 = smul.addr %s143, 4
        %s145 = scalar_lea.vmem %s2, %s144
        %s146 = smul.u32 2, %s19
      $region24: #{_forward_impl.1} parent=11 // pred_fallthru
        _
    $region12: #{_forward_impl.1} parent=5 // pred_fallthru
      _
    %p147 = scmp.lt.s32.totalorder %s9, 2
    // Predicated region
    $region25: #{_forward_impl.1} parent=5 // pred_check
      %p148 = pneg %p147
    $region26: #{_forward_impl.1} parent=5 // pred_check_branch
      %150 = sbr.rel (%p148) target = $region28
    $region27: #{_forward_impl.1} parent=5 // pred_region
      _
    $region28: #{_forward_impl.1} parent=5 // pred_fallthru
      _
    %p151 = scmp.le.s32.totalorder 1, %s9
    %p152 = scmp.lt.s32.totalorder %s9, 3
    %p153 = pnand %p151, %p152
    %p154 = pneg %p153
    // Predicated region
    $region29: #{_forward_impl.1} parent=5 // pred_check
      _
    $region30: #{_forward_impl.1} parent=5 // pred_check_branch
      %156 = sbr.rel (%p153) target = $region32
    $region31: #{_forward_impl.1} parent=5 // pred_region
      %s157 = ssub.s32 %s9, 1
      %p158 = pneg %p42
      %p159 = pneg %p39
      %p160 = pneg %p63
      %p161 = pneg %p60
      %s162 = smul.u32 2, %s19
      %p163 = scmp.lt.s32.totalorder %s162, 1
      %s164 = scalar_select %p163, %s162, 1
      %s165 = smul.addr %s164, 4
      %s166 = scalar_lea.vmem %s2, %s165
      %p167 = pneg %p89
      %p168 = pneg %p86
      %p169 = pneg %p117
      %p170 = pneg %p114
      %s171 = smul.u32 %s19, %s18
      %s172 = smul.u32 2, %s171
      %p173 = scmp.lt.s32.totalorder %s172, 1
      %s174 = scalar_select %p173, %s172, 1
      %s175 = smul.addr %s174, 4
      %s176 = scalar_lea.vmem %s3, %s175
      %s177 = smul.u32 2, %s19
      %p178 = scmp.lt.s32.totalorder %s177, 1
      %s179 = scalar_select %p178, %s177, 1
      %s180 = smul.addr %s179, 4
      %s181 = scalar_lea.vmem %s2, %s180
      %s182 = smul.u32 2, %s19
      %s183 = smul.u32 %s19, %s18
      %s184 = smul.u32 2, %s183
      %p185 = scmp.lt.s32.totalorder %s184, 1
      %s186 = scalar_select %p185, %s184, 1
      %s187 = smul.addr %s186, 4
      %s188 = scalar_lea.vmem %s3, %s187
      %s189 = smul.u32 %s19, %s18
      %s190 = smul.u32 2, %s189
      %p191 = scmp.eq.s32.totalorder %s18, 0
      // Predicated region
      $region33: #{_forward_impl.1} parent=31 // pred_check
        %p192 = pneg %p191
      $region34: #{_forward_impl.1} parent=31 // pred_check_branch
        %194 = sbr.rel (%p192) target = $region36
      $region35: #{_forward_impl.1} parent=31 // pred_region
        %p195 = scmp.eq.s32.totalorder %s19, 0
        // Predicated region
        $region37: #{_forward_impl.1} parent=35 // pred_check
          %p196 = pneg %p195
        $region38: #{_forward_impl.1} parent=35 // pred_check_branch
          %198 = sbr.rel (%p196) target = $region40
        $region39: #{_forward_impl.1} parent=35 // pred_region
          %vm199 = vcmask 18432
          %200 = vst.msk [vmem:[#allocation2] sm:$0x7] %vm199, 0.0
          %v201 = vld [vmem:[%s181] sm:$0x7]
          %vm202 = vcmask 2048
          %203 = vst.msk [vmem:[#allocation3] sm:$0x7] %vm202, %v201
        $region40: #{_forward_impl.1} parent=35 // pred_fallthru
          _
        %v204 = vld [vmem:[%s181] sm:$0x77]
        %v205 = vld [vmem:[#allocation3] sm:$0x7]
        %207 = vset.pattern.permute.xlu0 0
        %208 = vperm.xlu0 %207, %v205
        %v209 = vpop.permute.xlu0 %208
        %v211 = vunpack.c.l.s4 839922192
        %v212 = vunpack.c.0.s8 %v211
        %v213 = vlaneseq
        %v214 = vshrl.u32 %v213, 7
        %v215 = vsub.s32 %v212, %v214
        %v216 = vrot.slane %v209, %v215
        %v218 = vsub.f32 %v204, %v216
        %v219 = vmul.f32 %v218, %v218
        %v221 = vcombine.high %v219, %v219
        %vm223 = vcmask 1042432
        %v224 = vsel %vm223, %v219, 0.0
        %v225 = vsel %vm223, %v221, 0.0
        %v226 = vadd.f32 %v224, %v225
        %227 = vadd.xlane.f32.xlu0 %v226
        %v228 = vpop.xlane.xlu0 %227
        %v230 = vcombine.high %v218, %v218
        %v232 = vsel %vm223, %v218, 0.0
        %v233 = vsel %vm223, %v230, 0.0
        %v234 = vadd.f32 %v232, %v233
        %235 = vadd.xlane.f32.xlu0 %v234
        %v236 = vpop.xlane.xlu0 %235
        %v237 = vrot.slane %v218, 5
        %v238 = vrot.slane %v237, 4
        %v240 = vmul.f32 %v218, %v238
        %v242 = vlaneseq
        %v243 = vshrl.u32 %v242, 7
        %v244 = vsub.s32 0, %v243
        %v245 = vrot.slane %v240, %v244
        %v246 = vlaneseq
        %v247 = vshrl.u32 %v246, 7
        %v248 = vsub.s32 4, %v247
        %v249 = vrot.slane %v240, %v248
        %vm252 = vcmask 1040384
        %v253 = vsel %vm252, %v245, 0.0
        %v254 = vsel %vm252, %v249, 0.0
        %v255 = vadd.f32 %v253, %v254
        %256 = vadd.xlane.f32.xlu0 %v255
        %v257 = vpop.xlane.xlu0 %256
        %v258 = vlaneseq
        %v259 = vshrl.u32 %v258, 7
        %v260 = vsub.s32 1, %v259
        %v261 = vrot.slane %v240, %v260
        %v262 = vlaneseq
        %v263 = vshrl.u32 %v262, 7
        %v264 = vsub.s32 5, %v263
        %v265 = vrot.slane %v240, %v264
        %vm268 = vcmask 1041409
        %v269 = vsel %vm268, %v261, 0.0
        %v270 = vsel %vm268, %v265, 0.0
        %v271 = vadd.f32 %v269, %v270
        %272 = vadd.xlane.f32.xlu0 %v271
        %v273 = vpop.xlane.xlu0 %272
        %v274 = vrot.slane %v218, 6
        %v275 = vrot.slane %v274, 4
        %v277 = vmul.f32 %v218, %v275
        %v279 = vlaneseq
        %v280 = vshrl.u32 %v279, 7
        %v281 = vsub.s32 0, %v280
        %v282 = vrot.slane %v277, %v281
        %v283 = vlaneseq
        %v284 = vshrl.u32 %v283, 7
        %v285 = vsub.s32 4, %v284
        %v286 = vrot.slane %v277, %v285
        %v289 = vsel %vm252, %v282, 0.0
        %v290 = vsel %vm252, %v286, 0.0
        %v291 = vadd.f32 %v289, %v290
        %292 = vadd.xlane.f32.xlu0 %v291
        %v293 = vpop.xlane.xlu0 %292
        %v294 = vld [vmem:[#allocation2] sm:$0x7]
        %v295 = vadd.f32 %v294, %v228
        %vm296 = vcmask 2048
        %297 = vst.msk [vmem:[#allocation2] sm:$0x7] %vm296, %v295
        %v298 = vld [vmem:[#allocation2] sm:$0x7]
        %v299 = vadd.f32 %v298, %v236
        %vm300 = vcmask 10248
        %301 = vst.msk [vmem:[#allocation2] sm:$0x7] %vm300, %v299
        %v302 = vld [vmem:[#allocation2] sm:$0x1]
        %v303 = vadd.f32 %v302, %v257
        %vm304 = vcmask 16400
        %305 = vst.msk [vmem:[#allocation2] sm:$0x1] %vm304, %v303
        %v306 = vld [vmem:[#allocation2 + $0x1] sm:$0x1]
        %v308 = vrot.slane %v273, 1
        %v310 = vadd.f32 %v306, %v308
        %311 = vst.msk [vmem:[#allocation2 + $0x1] sm:$0x1] %vm304, %v310
        %v312 = vld [vmem:[#allocation2 + $0x2] sm:$0x1]
        %v313 = vadd.f32 %v312, %v293
        %314 = vst.msk [vmem:[#allocation2 + $0x2] sm:$0x1] %vm304, %v313
        // Predicated region
        $region41: #{_forward_impl.1} parent=35 // pred_check
          %p315 = pneg %p195
        $region42: #{_forward_impl.1} parent=35 // pred_check_branch
          %317 = sbr.rel (%p315) target = $region44
        $region43: #{_forward_impl.1} parent=35 // pred_region
          %v318 = vld [vmem:[#allocation2] sm:$0x7]
          %v319 = vmul.f32 %v318, %v318
          %v320 = vmul.f32 %v319, 0.00390625
          %322 = vrot.lane.b32.xlu0 %v320, 127
          %v323 = vpop.permute.xlu0 %322
          %v325 = vsub.f32 %v318, %v323
          %v327 = vrot.slane %v318, 1
          %v329 = vmul.f32 %v318, %v327
          %v330 = vmul.f32 %v329, 0.00390625
          %332 = vrot.lane.b32.xlu0 %v330, 1
          %v333 = vpop.permute.xlu0 %332
          %v335 = vsub.f32 %v318, %v333
          %v336 = vrot.slane %v318, 2
          %v338 = vmul.f32 %v318, %v336
          %v339 = vmul.f32 %v338, 0.00390625
          %v341 = vrot.slane %v339, 6
          %342 = vrot.lane.b32.xlu0 %v341, 1
          %v343 = vpop.permute.xlu0 %342
          %v345 = vsub.f32 %v318, %v343
          %v346 = vand.u32 2147483647, %v325
          %v348 = vrot.slane %v346, 1
          %v350 = vmax.f32 %v346, %v348
          %v351 = vand.u32 2147483647, %v335
          %v353 = vrot.slane %v351, 6
          %354 = vrot.lane.b32.xlu0 %v353, 126
          %v355 = vpop.permute.xlu0 %354
          %v357 = vmax.f32 %v346, %v355
          %v359 = vrot.slane %v357, 2
          %v361 = vmax.f32 %v350, %v359
          %v362 = vand.u32 2147483647, %v345
          %v364 = vrot.slane %v362, 1
          %v366 = vmax.f32 %v351, %v364
          %v368 = vrot.slane %v366, 1
          %369 = vrot.lane.b32.xlu0 %v368, 126
          %v370 = vpop.permute.xlu0 %369
          %v372 = vmax.f32 %v361, %v370
          %v373 = vmax.f32 %v372, 1e-30
          %v374 = vrcp.pop %v373
          %v375 = vmul.f32 1.0, %v374
          %v376 = vmul.f32 %v325, %v375
          %v378 = vrot.slane %v375, 7
          %v380 = vmul.f32 %v325, %v378
          %v381 = vrot.slane %v375, 6
          %v383 = vmul.f32 %v325, %v381
          %384 = vrot.lane.b32.xlu0 %v375, 2
          %v385 = vpop.permute.xlu0 %384
          %v387 = vmul.f32 %v335, %v385
          %388 = vrot.lane.b32.xlu0 %v378, 2
          %v389 = vpop.permute.xlu0 %388
          %v391 = vmul.f32 %v335, %v389
          %392 = vrot.lane.b32.xlu0 %v381, 2
          %v393 = vpop.permute.xlu0 %392
          %v395 = vmul.f32 %v345, %v393
          %v397 = vrot.slane %v380, 1
          %v399 = vadd.f32 %v376, %v397
          %v401 = vrot.slane %v383, 2
          %v403 = vadd.f32 %v399, %v401
          %v404 = vmul.f32 %v376, %v397
          %v405 = vmul.f32 %v376, %v401
          %v406 = vadd.f32 %v404, %v405
          %v407 = vrot.slane %v383, 1
          %v409 = vmul.f32 %v380, %v407
          %v411 = vrot.slane %v409, 1
          %v413 = vadd.f32 %v406, %v411
          %v414 = vmul.f32 %v387, %v387
          %416 = vrot.lane.b32.xlu0 %v414, 126
          %v417 = vpop.permute.xlu0 %416
          %v419 = vsub.f32 %v413, %v417
          %v420 = vmul.f32 %v395, %v395
          %v422 = vrot.slane %v420, 2
          %423 = vrot.lane.b32.xlu0 %v422, 126
          %v424 = vpop.permute.xlu0 %423
          %v426 = vsub.f32 %v419, %v424
          %v427 = vmul.f32 %v391, %v391
          %v429 = vrot.slane %v427, 1
          %430 = vrot.lane.b32.xlu0 %v429, 126
          %v431 = vpop.permute.xlu0 %430
          %v433 = vsub.f32 %v426, %v431
          %434 = vrot.lane.b32.xlu0 %v427, 126
          %v435 = vpop.permute.xlu0 %434
          %v437 = vsub.f32 %v409, %v435
          %v439 = vrot.slane %v437, 1
          %v441 = vmul.f32 %v376, %v439
          %442 = vrot.lane.b32.xlu0 %v401, 2
          %v443 = vpop.permute.xlu0 %442
          %v445 = vmul.f32 %v387, %v443
          %v447 = vrot.slane %v395, 1
          %v449 = vmul.f32 %v391, %v447
          %v451 = vrot.slane %v449, 1
          %v453 = vsub.f32 %v445, %v451
          %v454 = vmul.f32 %v387, %v453
          %456 = vrot.lane.b32.xlu0 %v454, 126
          %v457 = vpop.permute.xlu0 %456
          %v459 = vsub.f32 %v441, %v457
          %v461 = vrot.slane %v391, 1
          %v463 = vmul.f32 %v387, %v461
          %464 = vrot.lane.b32.xlu0 %v447, 126
          %v465 = vpop.permute.xlu0 %464
          %v467 = vmul.f32 %v380, %v465
          %v469 = vrot.slane %v467, 1
          %470 = vrot.lane.b32.xlu0 %v469, 2
          %v471 = vpop.permute.xlu0 %470
          %v473 = vsub.f32 %v463, %v471
          %v475 = vrot.slane %v473, 6
          %v477 = vmul.f32 %v395, %v475
          %v479 = vrot.slane %v477, 2
          %480 = vrot.lane.b32.xlu0 %v479, 126
          %v481 = vpop.permute.xlu0 %480
          %v483 = vadd.f32 %v459, %v481
          %v484 = vand.u32 2147483647, %v387
          %486 = vrot.lane.b32.xlu0 %v484, 126
          %v487 = vpop.permute.xlu0 %486
          %v489 = vadd.f32 %v376, %v487
          %v490 = vand.u32 2147483647, %v395
          %v492 = vrot.slane %v490, 2
          %493 = vrot.lane.b32.xlu0 %v492, 126
          %v494 = vpop.permute.xlu0 %493
          %v496 = vadd.f32 %v489, %v494
          %v497 = vrot.slane %v484, 7
          %498 = vrot.lane.b32.xlu0 %v497, 126
          %v499 = vpop.permute.xlu0 %498
          %v501 = vadd.f32 %v380, %v499
          %v502 = vand.u32 2147483647, %v391
          %504 = vrot.lane.b32.xlu0 %v502, 126
          %v505 = vpop.permute.xlu0 %504
          %v507 = vadd.f32 %v501, %v505
          %508 = vrot.lane.b32.xlu0 %v490, 126
          %v509 = vpop.permute.xlu0 %508
          %v511 = vadd.f32 %v383, %v509
          %v512 = vrot.slane %v502, 7
          %513 = vrot.lane.b32.xlu0 %v512, 126
          %v514 = vpop.permute.xlu0 %513
          %v516 = vadd.f32 %v511, %v514
          %v518 = vrot.slane %v507, 1
          %v520 = vmax.f32 %v496, %v518
          %v522 = vrot.slane %v516, 2
          %v524 = vmax.f32 %v520, %v522
          %v525 = vsub.f32 %v524, %v403
          %v526 = vmul.f32 %v525, %v524
          %v527 = vadd.f32 %v526, %v433
          %v528 = vmul.f32 %v527, %v524
          %v529 = vsub.f32 %v528, %v483
          %v530 = vmul.f32 %v524, 3.0
          %v531 = vmul.f32 %v403, 2.0
          %v532 = vsub.f32 %v530, %v531
          %v533 = vmul.f32 %v532, %v524
          %v534 = vadd.f32 %v533, %v433
          %v535 = vand.u32 2147483647, %v534
          %vm536 = vcmp.gt.f32.partialorder %v535, 1e-30
          %v537 = vrcp.pop %v534
          %v538 = vmul.f32 %v529, %v537
          %v539 = vsel %vm536, %v538, 0.0
          %v540 = vsub.f32 %v524, %v539
          %v541 = vsub.f32 %v540, %v403
          %v542 = vmul.f32 %v541, %v540
          %v543 = vadd.f32 %v542, %v433
          %v544 = vmul.f32 %v543, %v540
          %v545 = vsub.f32 %v544, %v483
          %v546 = vmul.f32 %v540, 3.0
          %v547 = vsub.f32 %v546, %v531
          %v548 = vmul.f32 %v547, %v540
          %v549 = vadd.f32 %v548, %v433
          %v550 = vand.u32 2147483647, %v549
          %vm551 = vcmp.gt.f32.partialorder %v550, 1e-30
          %v552 = vrcp.pop %v549
          %v553 = vmul.f32 %v545, %v552
          %v554 = vsel %vm551, %v553, 0.0
          %v555 = vsub.f32 %v540, %v554
          %v556 = vsub.f32 %v555, %v403
          %v557 = vmul.f32 %v556, %v555
          %v558 = vadd.f32 %v557, %v433
          %v559 = vmul.f32 %v558, %v555
          %v560 = vsub.f32 %v559, %v483
          %v561 = vmul.f32 %v555, 3.0
          %v562 = vsub.f32 %v561, %v531
          %v563 = vmul.f32 %v562, %v555
          %v564 = vadd.f32 %v563, %v433
          %v565 = vand.u32 2147483647, %v564
          %vm566 = vcmp.gt.f32.partialorder %v565, 1e-30
          %v567 = vrcp.pop %v564
          %v568 = vmul.f32 %v560, %v567
          %v569 = vsel %vm566, %v568, 0.0
          %v570 = vsub.f32 %v555, %v569
          %v571 = vsub.f32 %v570, %v403
          %v572 = vmul.f32 %v571, %v570
          %v573 = vadd.f32 %v572, %v433
          %v574 = vmul.f32 %v573, %v570
          %v575 = vsub.f32 %v574, %v483
          %v576 = vmul.f32 %v570, 3.0
          %v577 = vsub.f32 %v576, %v531
          %v578 = vmul.f32 %v577, %v570
          %v579 = vadd.f32 %v578, %v433
          %v580 = vand.u32 2147483647, %v579
          %vm581 = vcmp.gt.f32.partialorder %v580, 1e-30
          %v582 = vrcp.pop %v579
          %v583 = vmul.f32 %v575, %v582
          %v584 = vsel %vm581, %v583, 0.0
          %v585 = vsub.f32 %v570, %v584
          %v586 = vsub.f32 %v585, %v403
          %v587 = vmul.f32 %v586, %v585
          %v588 = vadd.f32 %v587, %v433
          %v589 = vmul.f32 %v588, %v585
          %v590 = vsub.f32 %v589, %v483
          %v591 = vmul.f32 %v585, 3.0
          %v592 = vsub.f32 %v591, %v531
          %v593 = vmul.f32 %v592, %v585
          %v594 = vadd.f32 %v593, %v433
          %v595 = vand.u32 2147483647, %v594
          %vm596 = vcmp.gt.f32.partialorder %v595, 1e-30
          %v597 = vrcp.pop %v594
          %v598 = vmul.f32 %v590, %v597
          %v599 = vsel %vm596, %v598, 0.0
          %v600 = vsub.f32 %v585, %v599
          %v601 = vsub.f32 %v600, %v403
          %v602 = vmul.f32 %v601, %v600
          %v603 = vadd.f32 %v602, %v433
          %v604 = vmul.f32 %v603, %v600
          %v605 = vsub.f32 %v604, %v483
          %v606 = vmul.f32 %v600, 3.0
          %v607 = vsub.f32 %v606, %v531
          %v608 = vmul.f32 %v607, %v600
          %v609 = vadd.f32 %v608, %v433
          %v610 = vand.u32 2147483647, %v609
          %vm611 = vcmp.gt.f32.partialorder %v610, 1e-30
          %v612 = vrcp.pop %v609
          %v613 = vmul.f32 %v605, %v612
          %v614 = vsel %vm611, %v613, 0.0
          %v615 = vsub.f32 %v600, %v614
          %v616 = vsub.f32 %v615, %v403
          %v617 = vmul.f32 %v616, %v615
          %v618 = vadd.f32 %v617, %v433
          %v619 = vmul.f32 %v618, %v615
          %v620 = vsub.f32 %v619, %v483
          %v621 = vmul.f32 %v615, 3.0
          %v622 = vsub.f32 %v621, %v531
          %v623 = vmul.f32 %v622, %v615
          %v624 = vadd.f32 %v623, %v433
          %v625 = vand.u32 2147483647, %v624
          %vm626 = vcmp.gt.f32.partialorder %v625, 1e-30
          %v627 = vrcp.pop %v624
          %v628 = vmul.f32 %v620, %v627
          %v629 = vsel %vm626, %v628, 0.0
          %v630 = vsub.f32 %v615, %v629
          %v631 = vsub.f32 %v630, %v403
          %v632 = vmul.f32 %v631, %v630
          %v633 = vadd.f32 %v632, %v433
          %v634 = vmul.f32 %v633, %v630
          %v635 = vsub.f32 %v634, %v483
          %v636 = vmul.f32 %v630, 3.0
          %v637 = vsub.f32 %v636, %v531
          %v638 = vmul.f32 %v637, %v630
          %v639 = vadd.f32 %v638, %v433
          %v640 = vand.u32 2147483647, %v639
          %vm641 = vcmp.gt.f32.partialorder %v640, 1e-30
          %v642 = vrcp.pop %v639
          %v643 = vmul.f32 %v635, %v642
          %v644 = vsel %vm641, %v643, 0.0
          %v645 = vsub.f32 %v630, %v644
          %v646 = vsub.f32 %v645, %v403
          %v647 = vmul.f32 %v646, %v645
          %v648 = vadd.f32 %v647, %v433
          %v649 = vmul.f32 %v648, %v645
          %v650 = vsub.f32 %v649, %v483
          %v651 = vmul.f32 %v645, 3.0
          %v652 = vsub.f32 %v651, %v531
          %v653 = vmul.f32 %v652, %v645
          %v654 = vadd.f32 %v653, %v433
          %v655 = vand.u32 2147483647, %v654
          %vm656 = vcmp.gt.f32.partialorder %v655, 1e-30
          %v657 = vrcp.pop %v654
          %v658 = vmul.f32 %v650, %v657
          %v659 = vsel %vm656, %v658, 0.0
          %v660 = vsub.f32 %v645, %v659
          %v661 = vsub.f32 %v660, %v403
          %v662 = vmul.f32 %v661, %v660
          %v663 = vadd.f32 %v662, %v433
          %v664 = vmul.f32 %v663, %v660
          %v665 = vsub.f32 %v664, %v483
          %v666 = vmul.f32 %v660, 3.0
          %v667 = vsub.f32 %v666, %v531
          %v668 = vmul.f32 %v667, %v660
          %v669 = vadd.f32 %v668, %v433
          %v670 = vand.u32 2147483647, %v669
          %vm671 = vcmp.gt.f32.partialorder %v670, 1e-30
          %v672 = vrcp.pop %v669
          %v673 = vmul.f32 %v665, %v672
          %v674 = vsel %vm671, %v673, 0.0
          %v675 = vsub.f32 %v660, %v674
          %v676 = vsub.f32 %v675, %v403
          %v677 = vmul.f32 %v676, %v675
          %v678 = vadd.f32 %v677, %v433
          %v679 = vmul.f32 %v678, %v675
          %v680 = vsub.f32 %v679, %v483
          %v681 = vmul.f32 %v675, 3.0
          %v682 = vsub.f32 %v681, %v531
          %v683 = vmul.f32 %v682, %v675
          %v684 = vadd.f32 %v683, %v433
          %v685 = vand.u32 2147483647, %v684
          %vm686 = vcmp.gt.f32.partialorder %v685, 1e-30
          %v687 = vrcp.pop %v684
          %v688 = vmul.f32 %v680, %v687
          %v689 = vsel %vm686, %v688, 0.0
          %v690 = vsub.f32 %v675, %v689
          %v691 = vsub.f32 %v690, %v403
          %v692 = vmul.f32 %v691, %v690
          %v693 = vadd.f32 %v692, %v433
          %v694 = vmul.f32 %v693, %v690
          %v695 = vsub.f32 %v694, %v483
          %v696 = vmul.f32 %v690, 3.0
          %v697 = vsub.f32 %v696, %v531
          %v698 = vmul.f32 %v697, %v690
          %v699 = vadd.f32 %v698, %v433
          %v700 = vand.u32 2147483647, %v699
          %vm701 = vcmp.gt.f32.partialorder %v700, 1e-30
          %v702 = vrcp.pop %v699
          %v703 = vmul.f32 %v695, %v702
          %v704 = vsel %vm701, %v703, 0.0
          %v705 = vsub.f32 %v690, %v704
          %v706 = vsub.f32 %v705, %v403
          %v707 = vmul.f32 %v706, %v705
          %v708 = vadd.f32 %v707, %v433
          %v709 = vmul.f32 %v708, %v705
          %v710 = vsub.f32 %v709, %v483
          %v711 = vmul.f32 %v705, 3.0
          %v712 = vsub.f32 %v711, %v531
          %v713 = vmul.f32 %v712, %v705
          %v714 = vadd.f32 %v713, %v433
          %v715 = vand.u32 2147483647, %v714
          %vm716 = vcmp.gt.f32.partialorder %v715, 1e-30
          %v717 = vrcp.pop %v714
          %v718 = vmul.f32 %v710, %v717
          %v719 = vsel %vm716, %v718, 0.0
          %v720 = vsub.f32 %v705, %v719
          %v721 = vsub.f32 %v720, %v403
          %v722 = vmul.f32 %v721, %v720
          %v723 = vadd.f32 %v722, %v433
          %v724 = vmul.f32 %v723, %v720
          %v725 = vsub.f32 %v724, %v483
          %v726 = vmul.f32 %v720, 3.0
          %v727 = vsub.f32 %v726, %v531
          %v728 = vmul.f32 %v727, %v720
          %v729 = vadd.f32 %v728, %v433
          %v730 = vand.u32 2147483647, %v729
          %vm731 = vcmp.gt.f32.partialorder %v730, 1e-30
          %v732 = vrcp.pop %v729
          %v733 = vmul.f32 %v725, %v732
          %v734 = vsel %vm731, %v733, 0.0
          %v735 = vsub.f32 %v720, %v734
          %v736 = vsub.f32 %v735, %v403
          %v737 = vmul.f32 %v736, %v735
          %v738 = vadd.f32 %v737, %v433
          %v739 = vmul.f32 %v738, %v735
          %v740 = vsub.f32 %v739, %v483
          %v741 = vmul.f32 %v735, 3.0
          %v742 = vsub.f32 %v741, %v531
          %v743 = vmul.f32 %v742, %v735
          %v744 = vadd.f32 %v743, %v433
          %v745 = vand.u32 2147483647, %v744
          %vm746 = vcmp.gt.f32.partialorder %v745, 1e-30
          %v747 = vrcp.pop %v744
          %v748 = vmul.f32 %v740, %v747
          %v749 = vsel %vm746, %v748, 0.0
          %v750 = vsub.f32 %v735, %v749
          %v751 = vsub.f32 %v750, %v403
          %v752 = vmul.f32 %v751, %v750
          %v753 = vadd.f32 %v752, %v433
          %v754 = vmul.f32 %v753, %v750
          %v755 = vsub.f32 %v754, %v483
          %v756 = vmul.f32 %v750, 3.0
          %v757 = vsub.f32 %v756, %v531
          %v758 = vmul.f32 %v757, %v750
          %v759 = vadd.f32 %v758, %v433
          %v760 = vand.u32 2147483647, %v759
          %vm761 = vcmp.gt.f32.partialorder %v760, 1e-30
          %v762 = vrcp.pop %v759
          %v763 = vmul.f32 %v755, %v762
          %v764 = vsel %vm761, %v763, 0.0
          %v765 = vsub.f32 %v750, %v764
          %v766 = vsub.f32 %v765, %v403
          %v767 = vmul.f32 %v766, %v765
          %v768 = vadd.f32 %v767, %v433
          %v769 = vmul.f32 %v768, %v765
          %v770 = vsub.f32 %v769, %v483
          %v771 = vmul.f32 %v765, 3.0
          %v772 = vsub.f32 %v771, %v531
          %v773 = vmul.f32 %v772, %v765
          %v774 = vadd.f32 %v773, %v433
          %v775 = vand.u32 2147483647, %v774
          %vm776 = vcmp.gt.f32.partialorder %v775, 1e-30
          %v777 = vrcp.pop %v774
          %v778 = vmul.f32 %v770, %v777
          %v779 = vsel %vm776, %v778, 0.0
          %v780 = vsub.f32 %v765, %v779
          %v781 = vsub.f32 %v780, %v403
          %v782 = vmul.f32 %v781, %v780
          %v783 = vadd.f32 %v782, %v433
          %v784 = vmul.f32 %v783, %v780
          %v785 = vsub.f32 %v784, %v483
          %v786 = vmul.f32 %v780, 3.0
          %v787 = vsub.f32 %v786, %v531
          %v788 = vmul.f32 %v787, %v780
          %v789 = vadd.f32 %v788, %v433
          %v790 = vand.u32 2147483647, %v789
          %vm791 = vcmp.gt.f32.partialorder %v790, 1e-30
          %v792 = vrcp.pop %v789
          %v793 = vmul.f32 %v785, %v792
          %v794 = vsel %vm791, %v793, 0.0
          %v795 = vsub.f32 %v780, %v794
          %v796 = vsub.f32 %v795, %v403
          %v797 = vmul.f32 %v796, %v795
          %v798 = vadd.f32 %v797, %v433
          %v799 = vmul.f32 %v798, %v795
          %v800 = vsub.f32 %v799, %v483
          %v801 = vmul.f32 %v795, 3.0
          %v802 = vsub.f32 %v801, %v531
          %v803 = vmul.f32 %v802, %v795
          %v804 = vadd.f32 %v803, %v433
          %v805 = vand.u32 2147483647, %v804
          %vm806 = vcmp.gt.f32.partialorder %v805, 1e-30
          %v807 = vrcp.pop %v804
          %v808 = vmul.f32 %v800, %v807
          %v809 = vsel %vm806, %v808, 0.0
          %v810 = vsub.f32 %v795, %v809
          %v811 = vsub.f32 %v810, %v403
          %v812 = vmul.f32 %v811, %v810
          %v813 = vadd.f32 %v812, %v433
          %v814 = vmul.f32 %v813, %v810
          %v815 = vsub.f32 %v814, %v483
          %v816 = vmul.f32 %v810, 3.0
          %v817 = vsub.f32 %v816, %v531
          %v818 = vmul.f32 %v817, %v810
          %v819 = vadd.f32 %v818, %v433
          %v820 = vand.u32 2147483647, %v819
          %vm821 = vcmp.gt.f32.partialorder %v820, 1e-30
          %v822 = vrcp.pop %v819
          %v823 = vmul.f32 %v815, %v822
          %v824 = vsel %vm821, %v823, 0.0
          %v825 = vsub.f32 %v810, %v824
          %v826 = vsub.f32 %v825, %v403
          %v827 = vmul.f32 %v826, %v825
          %v828 = vadd.f32 %v827, %v433
          %v829 = vmul.f32 %v828, %v825
          %v830 = vsub.f32 %v829, %v483
          %v831 = vmul.f32 %v825, 3.0
          %v832 = vsub.f32 %v831, %v531
          %v833 = vmul.f32 %v832, %v825
          %v834 = vadd.f32 %v833, %v433
          %v835 = vand.u32 2147483647, %v834
          %vm836 = vcmp.gt.f32.partialorder %v835, 1e-30
          %v837 = vrcp.pop %v834
          %v838 = vmul.f32 %v830, %v837
          %v839 = vsel %vm836, %v838, 0.0
          %v840 = vsub.f32 %v825, %v839
          %v841 = vsub.f32 %v840, %v403
          %v842 = vmul.f32 %v841, %v840
          %v843 = vadd.f32 %v842, %v433
          %v844 = vmul.f32 %v843, %v840
          %v845 = vsub.f32 %v844, %v483
          %v846 = vmul.f32 %v840, 3.0
          %v847 = vsub.f32 %v846, %v531
          %v848 = vmul.f32 %v847, %v840
          %v849 = vadd.f32 %v848, %v433
          %v850 = vand.u32 2147483647, %v849
          %vm851 = vcmp.gt.f32.partialorder %v850, 1e-30
          %v852 = vrcp.pop %v849
          %v853 = vmul.f32 %v845, %v852
          %v854 = vsel %vm851, %v853, 0.0
          %v855 = vsub.f32 %v840, %v854
          %v856 = vsub.f32 %v855, %v403
          %v857 = vmul.f32 %v856, %v855
          %v858 = vadd.f32 %v857, %v433
          %v859 = vmul.f32 %v858, %v855
          %v860 = vsub.f32 %v859, %v483
          %v861 = vmul.f32 %v855, 3.0
          %v862 = vsub.f32 %v861, %v531
          %v863 = vmul.f32 %v862, %v855
          %v864 = vadd.f32 %v863, %v433
          %v865 = vand.u32 2147483647, %v864
          %vm866 = vcmp.gt.f32.partialorder %v865, 1e-30
          %v867 = vrcp.pop %v864
          %v868 = vmul.f32 %v860, %v867
          %v869 = vsel %vm866, %v868, 0.0
          %v870 = vsub.f32 %v855, %v869
          %v871 = vsub.f32 %v870, %v403
          %v872 = vmul.f32 %v871, %v870
          %v873 = vadd.f32 %v872, %v433
          %v874 = vmul.f32 %v873, %v870
          %v875 = vsub.f32 %v874, %v483
          %v876 = vmul.f32 %v870, 3.0
          %v877 = vsub.f32 %v876, %v531
          %v878 = vmul.f32 %v877, %v870
          %v879 = vadd.f32 %v878, %v433
          %v880 = vand.u32 2147483647, %v879
          %vm881 = vcmp.gt.f32.partialorder %v880, 1e-30
          %v882 = vrcp.pop %v879
          %v883 = vmul.f32 %v875, %v882
          %v884 = vsel %vm881, %v883, 0.0
          %v885 = vsub.f32 %v870, %v884
          %v886 = vsub.f32 %v376, %v885
          %v888 = vrot.slane %v885, 7
          %v890 = vsub.f32 %v380, %v888
          %v891 = vrot.slane %v885, 6
          %v893 = vsub.f32 %v383, %v891
          %v895 = vrot.slane %v890, 7
          %896 = vrot.lane.b32.xlu0 %v895, 2
          %v897 = vpop.permute.xlu0 %896
          %v899 = vmul.f32 %v395, %v897
          %v901 = vrot.slane %v899, 2
          %v903 = vsub.f32 %v463, %v901
          %v905 = vrot.slane %v387, 6
          %v907 = vmul.f32 %v395, %v905
          %908 = vrot.lane.b32.xlu0 %v461, 126
          %v909 = vpop.permute.xlu0 %908
          %v911 = vmul.f32 %v886, %v909
          %v913 = vrot.slane %v911, 6
          %914 = vrot.lane.b32.xlu0 %v913, 2
          %v915 = vpop.permute.xlu0 %914
          %v917 = vsub.f32 %v907, %v915
          %v918 = vrot.slane %v890, 1
          %v920 = vmul.f32 %v886, %v918
          %v921 = vsub.f32 %v920, %v417
          %v923 = vrot.slane %v893, 2
          %924 = vrot.lane.b32.xlu0 %v923, 2
          %v925 = vpop.permute.xlu0 %924
          %v927 = vmul.f32 %v387, %v925
          %v928 = vsub.f32 %v927, %v451
          %v930 = vmul.f32 %v886, %v923
          %v932 = vrot.slane %v930, 6
          %933 = vrot.lane.b32.xlu0 %v932, 2
          %v934 = vpop.permute.xlu0 %933
          %v936 = vsub.f32 %v420, %v934
          %v938 = vrot.slane %v907, 2
          %939 = vrot.lane.b32.xlu0 %v938, 126
          %v940 = vpop.permute.xlu0 %939
          %v942 = vsub.f32 %v911, %v940
          %v943 = vrot.slane %v893, 1
          %v945 = vmul.f32 %v890, %v943
          %v946 = vsub.f32 %v945, %v435
          %v948 = vrot.slane %v927, 7
          %v950 = vsub.f32 %v449, %v948
          %v951 = vmul.f32 %v903, %v903
          %v952 = vmul.f32 %v917, %v917
          %v954 = vrot.slane %v952, 2
          %v956 = vadd.f32 %v951, %v954
          %v957 = vmul.f32 %v921, %v921
          %959 = vrot.lane.b32.xlu0 %v957, 2
          %v960 = vpop.permute.xlu0 %959
          %v962 = vadd.f32 %v956, %v960
          %v963 = vmul.f32 %v928, %v928
          %v964 = vmul.f32 %v936, %v936
          %v966 = vrot.slane %v964, 2
          %v968 = vadd.f32 %v963, %v966
          %v969 = vmul.f32 %v942, %v942
          %971 = vrot.lane.b32.xlu0 %v969, 2
          %v972 = vpop.permute.xlu0 %971
          %v974 = vadd.f32 %v968, %v972
          %v975 = vmul.f32 %v946, %v946
          %v976 = vmul.f32 %v950, %v950
          %978 = vrot.lane.b32.xlu0 %v976, 126
          %v979 = vpop.permute.xlu0 %978
          %v981 = vadd.f32 %v975, %v979
          %v983 = vrot.slane %v951, 7
          %984 = vrot.lane.b32.xlu0 %v983, 126
          %v985 = vpop.permute.xlu0 %984
          %v987 = vadd.f32 %v981, %v985
          %vm988 = vcmp.ge.f32.partialorder %v962, %v974
          %v990 = vrot.slane %v987, 1
          %991 = vrot.lane.b32.xlu0 %v990, 2
          %v992 = vpop.permute.xlu0 %991
          %vm994 = vcmp.ge.f32.partialorder %v962, %v992
          %vm995 = vmand %vm988, %vm994
          %vm996 = vmxor %vm995, 1
          %vm997 = vcmp.ge.f32.partialorder %v974, %v992
          %vm998 = vmand %vm996, %vm997
          %v1000 = vrot.slane %v946, 1
          %1001 = vrot.lane.b32.xlu0 %v1000, 2
          %v1002 = vpop.permute.xlu0 %1001
          %v1004 = vsel %vm998, %v928, %v1002
          %v1005 = vsel %vm995, %v903, %v1004
          %v1007 = vrot.slane %v936, 2
          %v1010 = vrot.slane %v950, 1
          %v1012 = vsel %vm998, %v1007, %v1010
          %v1014 = vrot.slane %v917, 2
          %v1016 = vsel %vm995, %v1014, %v1012
          %1018 = vrot.lane.b32.xlu0 %v942, 2
          %v1019 = vpop.permute.xlu0 %1018
          %v1021 = vsel %vm998, %v1019, %v903
          %1023 = vrot.lane.b32.xlu0 %v921, 2
          %v1024 = vpop.permute.xlu0 %1023
          %v1026 = vsel %vm995, %v1024, %v1021
          %v1027 = vmax.f32 %v962, %v974
          %v1028 = vmax.f32 %v1027, %v992
          %vm1029 = vcmp.lt.f32.partialorder %v1028, 1e-24
          %v1030 = vsel %vm1029, 0.0, %v1005
          %v1031 = vsel %vm1029, 0.0, %v1016
          %v1032 = vsel %vm1029, 1.0, %v1026
          %v1033 = vmul.f32 %v1030, %v1030
          %v1034 = vmul.f32 %v1031, %v1031
          %v1035 = vadd.f32 %v1033, %v1034
          %v1036 = vmul.f32 %v1032, %v1032
          %v1037 = vadd.f32 %v1035, %v1036
          %v1038 = vmax.f32 %v1037, 1e-30
          %v1039 = vrsqrt.pop %v1038
          %v1040 = vmul.f32 %v1030, %v1039
          %v1041 = vmul.f32 %v1031, %v1039
          %v1042 = vmul.f32 %v1032, %v1039
          %v1043 = vld [vmem:[%s0] sm:$0x1]
          %1045 = vrot.lane.b32.xlu0 %v1043, 126
          %v1046 = vpop.permute.xlu0 %1045
          %v1048 = vmul.f32 %v1043, %v1046
          %1049 = vrot.lane.b32.xlu0 %v1043, 2
          %v1050 = vpop.permute.xlu0 %1049
          %v1052 = vmul.f32 %v1043, %v1050
          %1054 = vrot.lane.b32.xlu0 %v1052, 125
          %v1055 = vpop.permute.xlu0 %1054
          %v1057 = vadd.f32 %v1048, %v1055
          %v1058 = vmul.f32 %v1057, 2.0
          %1059 = vrot.lane.b32.xlu0 %v1043, 127
          %v1060 = vpop.permute.xlu0 %1059
          %v1062 = vmul.f32 %v1043, %v1060
          %1063 = vrot.lane.b32.xlu0 %v1043, 3
          %v1064 = vpop.permute.xlu0 %1063
          %v1066 = vmul.f32 %v1043, %v1064
          %1068 = vrot.lane.b32.xlu0 %v1066, 126
          %v1069 = vpop.permute.xlu0 %1068
          %v1071 = vsub.f32 %v1062, %v1069
          %v1072 = vmul.f32 %v1071, 2.0
          %v1073 = vmul.f32 %v1043, %v1043
          %1075 = vrot.lane.b32.xlu0 %v1073, 127
          %v1076 = vpop.permute.xlu0 %1075
          %v1078 = vadd.f32 %v1073, %v1076
          %v1079 = vmul.f32 %v1078, 2.0
          %v1080 = vsub.f32 1.0, %v1079
          %v1083 = vunpack.c.l.s4 1966171168
          %v1084 = vunpack.c.0.s8 %v1083
          %v1085 = vlaneseq
          %v1086 = vshrl.u32 %v1085, 7
          %v1087 = vsub.s32 %v1084, %v1086
          %v1088 = vrot.slane %v1040, %v1087
          %v1090 = vunpack.c.l.s4 1966171168
          %v1091 = vunpack.c.0.s8 %v1090
          %v1092 = vlaneseq
          %v1093 = vshrl.u32 %v1092, 7
          %v1094 = vsub.s32 %v1091, %v1093
          %v1095 = vrot.slane %v1088, %v1094
          %1096 = vrot.lane.b32.xlu0 %v1095, 126
          %v1097 = vpop.permute.xlu0 %1096
          %v1099 = vmul.f32 %v1058, %v1097
          %v1102 = vunpack.c.l.s4 1966171168
          %v1103 = vunpack.c.0.s8 %v1102
          %v1104 = vlaneseq
          %v1105 = vshrl.u32 %v1104, 7
          %v1106 = vsub.s32 %v1103, %v1105
          %v1107 = vrot.slane %v1041, %v1106
          %v1109 = vunpack.c.l.s4 1966171168
          %v1110 = vunpack.c.0.s8 %v1109
          %v1111 = vlaneseq
          %v1112 = vshrl.u32 %v1111, 7
          %v1113 = vsub.s32 %v1110, %v1112
          %v1114 = vrot.slane %v1107, %v1113
          %1115 = vrot.lane.b32.xlu0 %v1114, 127
          %v1116 = vpop.permute.xlu0 %1115
          %v1118 = vmul.f32 %v1072, %v1116
          %1120 = vrot.lane.b32.xlu0 %v1118, 127
          %v1121 = vpop.permute.xlu0 %1120
          %v1123 = vadd.f32 %v1099, %v1121
          %v1126 = vunpack.c.l.s4 1966171168
          %v1127 = vunpack.c.0.s8 %v1126
          %v1128 = vlaneseq
          %v1129 = vshrl.u32 %v1128, 7
          %v1130 = vsub.s32 %v1127, %v1129
          %v1131 = vrot.slane %v1042, %v1130
          %v1133 = vunpack.c.l.s4 1966171168
          %v1134 = vunpack.c.0.s8 %v1133
          %v1135 = vlaneseq
          %v1136 = vshrl.u32 %v1135, 7
          %v1137 = vsub.s32 %v1134, %v1136
          %v1138 = vrot.slane %v1131, %v1137
          %1139 = vrot.lane.b32.xlu0 %v1138, 126
          %v1140 = vpop.permute.xlu0 %1139
          %v1142 = vmul.f32 %v1080, %v1140
          %v1143 = vadd.f32 %v1123, %v1142
          %vm1144 = vcmp.lt.f32.partialorder %v1143, 0.0
          %v1145 = vsel %vm1144, -1.0, 1.0
          %v1147 = vlaneseq
          %v1148 = vshrl.u32 %v1147, 7
          %v1149 = vsub.s32 0, %v1148
          %v1150 = vrot.slane %v1145, %v1149
          %1151 = vrot.lane.b32.xlu0 %v1150, 2
          %v1152 = vpop.permute.xlu0 %1151
          %v1154 = vmul.f32 %v1040, %v1152
          %v1155 = vmul.f32 %v1041, %v1152
          %v1156 = vmul.f32 %v1042, %v1152
          %v1157 = vld [vmem:[%s1] sm:$0x1]
          %v1160 = vunpack.c.l.s4 1966171168
          %v1161 = vunpack.c.0.s8 %v1160
          %v1162 = vlaneseq
          %v1163 = vshrl.u32 %v1162, 7
          %v1164 = vsub.s32 %v1161, %v1163
          %v1165 = vrot.slane %v1156, %v1164
          %v1167 = vunpack.c.l.s4 1966171168
          %v1168 = vunpack.c.0.s8 %v1167
          %v1169 = vlaneseq
          %v1170 = vshrl.u32 %v1169, 7
          %v1171 = vsub.s32 %v1168, %v1170
          %v1172 = vrot.slane %v1165, %v1171
          %1173 = vrot.lane.b32.xlu0 %v1172, 127
          %v1174 = vpop.permute.xlu0 %1173
          %v1176 = vmul.f32 %v1157, %v1174
          %v1177 = vmul.f32 %v1157, %v1155
          %1179 = vrot.lane.b32.xlu0 %v1177, 127
          %v1180 = vpop.permute.xlu0 %1179
          %v1182 = vsub.f32 %v1176, %v1180
          %v1183 = vmul.f32 %v1157, %v1154
          %1184 = vrot.lane.b32.xlu0 %v1172, 126
          %v1185 = vpop.permute.xlu0 %1184
          %v1187 = vmul.f32 %v1157, %v1185
          %1189 = vrot.lane.b32.xlu0 %v1187, 2
          %v1190 = vpop.permute.xlu0 %1189
          %v1192 = vsub.f32 %v1183, %v1190
          %v1195 = vunpack.c.l.s4 1966171168
          %v1196 = vunpack.c.0.s8 %v1195
          %v1197 = vlaneseq
          %v1198 = vshrl.u32 %v1197, 7
          %v1199 = vsub.s32 %v1196, %v1198
          %v1200 = vrot.slane %v1155, %v1199
          %v1202 = vunpack.c.l.s4 1966171168
          %v1203 = vunpack.c.0.s8 %v1202
          %v1204 = vlaneseq
          %v1205 = vshrl.u32 %v1204, 7
          %v1206 = vsub.s32 %v1203, %v1205
          %v1207 = vrot.slane %v1200, %v1206
          %1208 = vrot.lane.b32.xlu0 %v1207, 126
          %v1209 = vpop.permute.xlu0 %1208
          %v1211 = vmul.f32 %v1157, %v1209
          %v1214 = vunpack.c.l.s4 1966171168
          %v1215 = vunpack.c.0.s8 %v1214
          %v1216 = vlaneseq
          %v1217 = vshrl.u32 %v1216, 7
          %v1218 = vsub.s32 %v1215, %v1217
          %v1219 = vrot.slane %v1154, %v1218
          %v1221 = vunpack.c.l.s4 1966171168
          %v1222 = vunpack.c.0.s8 %v1221
          %v1223 = vlaneseq
          %v1224 = vshrl.u32 %v1223, 7
          %v1225 = vsub.s32 %v1222, %v1224
          %v1226 = vrot.slane %v1219, %v1225
          %1227 = vrot.lane.b32.xlu0 %v1226, 127
          %v1228 = vpop.permute.xlu0 %1227
          %v1230 = vmul.f32 %v1157, %v1228
          %1232 = vrot.lane.b32.xlu0 %v1230, 127
          %v1233 = vpop.permute.xlu0 %1232
          %v1235 = vsub.f32 %v1211, %v1233
          %v1236 = vmul.f32 %v1192, %v1157
          %1238 = vrot.lane.b32.xlu0 %v1157, 127
          %v1239 = vpop.permute.xlu0 %1238
          %v1241 = vmul.f32 %v1235, %v1239
          %1243 = vrot.lane.b32.xlu0 %v1241, 2
          %v1244 = vpop.permute.xlu0 %1243
          %v1246 = vsub.f32 %v1236, %v1244
          %v1247 = vmul.f32 %v1235, %v1157
          %v1248 = vmul.f32 %v1182, %v1239
          %1250 = vrot.lane.b32.xlu0 %v1248, 127
          %v1251 = vpop.permute.xlu0 %1250
          %v1253 = vsub.f32 %v1247, %v1251
          %v1254 = vmul.f32 %v1182, %v1157
          %1255 = vrot.lane.b32.xlu0 %v1157, 2
          %v1256 = vpop.permute.xlu0 %1255
          %v1258 = vmul.f32 %v1192, %v1256
          %1260 = vrot.lane.b32.xlu0 %v1258, 127
          %v1261 = vpop.permute.xlu0 %1260
          %v1263 = vsub.f32 %v1254, %v1261
          %v1264 = vld [vmem:[#allocation3] sm:$0x1]
          %v1265 = vld [vmem:[#allocation3 + $0x1] sm:$0x1]
          %v1266 = vld [vmem:[#allocation3 + $0x2] sm:$0x1]
          %v1268 = vlaneseq
          %v1269 = vshrl.u32 %v1268, 7
          %v1270 = vsub.s32 0, %v1269
          %v1271 = vrot.slane %v1182, %v1270
          %1272 = vrot.lane.b32.xlu0 %v1271, 127
          %v1273 = vpop.permute.xlu0 %1272
          %vm1275 = vcmask 0
          %1276 = vst.msk [vmem:[#allocation4] sm:$0x1] %vm1275, %v1273
          %v1278 = vlaneseq
          %v1279 = vshrl.u32 %v1278, 7
          %v1280 = vsub.s32 0, %v1279
          %v1281 = vrot.slane %v1192, %v1280
          %1282 = vrot.lane.b32.xlu0 %v1281, 127
          %v1283 = vpop.permute.xlu0 %1282
          %vm1285 = vcmask 8200
          %1286 = vst.msk [vmem:[#allocation4] sm:$0x1] %vm1285, %v1283
          %v1288 = vlaneseq
          %v1289 = vshrl.u32 %v1288, 7
          %v1290 = vsub.s32 0, %v1289
          %v1291 = vrot.slane %v1235, %v1290
          %1292 = vrot.lane.b32.xlu0 %v1291, 2
          %v1293 = vpop.permute.xlu0 %1292
          %1295 = vst.msk [vmem:[#allocation4] sm:$0x1] %vm304, %v1293
          %v1298 = vunpack.c.l.s4 1966171168
          %v1299 = vunpack.c.0.s8 %v1298
          %v1300 = vlaneseq
          %v1301 = vshrl.u32 %v1300, 7
          %v1302 = vsub.s32 %v1299, %v1301
          %v1303 = vrot.slane %v1264, %v1302
          %v1305 = vunpack.c.l.s4 1966171168
          %v1306 = vunpack.c.0.s8 %v1305
          %v1307 = vlaneseq
          %v1308 = vshrl.u32 %v1307, 7
          %v1309 = vsub.s32 %v1306, %v1308
          %v1310 = vrot.slane %v1303, %v1309
          %1311 = vrot.lane.b32.xlu0 %v1310, 1
          %v1312 = vpop.permute.xlu0 %1311
          %v1314 = vmul.f32 %v1182, %v1312
          %v1317 = vunpack.c.l.s4 1966171168
          %v1318 = vunpack.c.0.s8 %v1317
          %v1319 = vlaneseq
          %v1320 = vshrl.u32 %v1319, 7
          %v1321 = vsub.s32 %v1318, %v1320
          %v1322 = vrot.slane %v1265, %v1321
          %v1324 = vunpack.c.l.s4 1966171168
          %v1325 = vunpack.c.0.s8 %v1324
          %v1326 = vlaneseq
          %v1327 = vshrl.u32 %v1326, 7
          %v1328 = vsub.s32 %v1325, %v1327
          %v1329 = vrot.slane %v1322, %v1328
          %1330 = vrot.lane.b32.xlu0 %v1329, 2
          %v1331 = vpop.permute.xlu0 %1330
          %v1333 = vmul.f32 %v1192, %v1331
          %1335 = vrot.lane.b32.xlu0 %v1333, 127
          %v1336 = vpop.permute.xlu0 %1335
          %v1338 = vadd.f32 %v1314, %v1336
          %v1339 = vmul.f32 %v1235, %v1266
          %1341 = vrot.lane.b32.xlu0 %v1339, 1
          %v1342 = vpop.permute.xlu0 %1341
          %v1344 = vadd.f32 %v1338, %v1342
          %v1346 = vlaneseq
          %v1347 = vshrl.u32 %v1346, 7
          %v1348 = vsub.s32 0, %v1347
          %v1349 = vrot.slane %v1344, %v1348
          %1350 = vrot.lane.b32.xlu0 %v1349, 2
          %v1351 = vpop.permute.xlu0 %1350
          %vm1353 = vcmask 24600
          %1354 = vst.msk [vmem:[#allocation4] sm:$0x1] %vm1353, %v1351
          %1355 = vst.msk [vmem:[#allocation4 + $0x1] sm:$0x1] %vm1275, %v1157
          %1356 = vst.msk [vmem:[#allocation4 + $0x1] sm:$0x1] %vm1285, %v1157
          %1357 = vst.msk [vmem:[#allocation4 + $0x1] sm:$0x1] %vm304, %v1157
          %v1358 = vmul.f32 %v1157, %v1264
          %1359 = vrot.lane.b32.xlu0 %v1329, 1
          %v1360 = vpop.permute.xlu0 %1359
          %v1362 = vmul.f32 %v1157, %v1360
          %1364 = vrot.lane.b32.xlu0 %v1362, 127
          %v1365 = vpop.permute.xlu0 %1364
          %v1367 = vadd.f32 %v1358, %v1365
          %v1370 = vunpack.c.l.s4 1966171168
          %v1371 = vunpack.c.0.s8 %v1370
          %v1372 = vlaneseq
          %v1373 = vshrl.u32 %v1372, 7
          %v1374 = vsub.s32 %v1371, %v1373
          %v1375 = vrot.slane %v1266, %v1374
          %v1377 = vunpack.c.l.s4 1966171168
          %v1378 = vunpack.c.0.s8 %v1377
          %v1379 = vlaneseq
          %v1380 = vshrl.u32 %v1379, 7
          %v1381 = vsub.s32 %v1378, %v1380
          %v1382 = vrot.slane %v1375, %v1381
          %1383 = vrot.lane.b32.xlu0 %v1382, 2
          %v1384 = vpop.permute.xlu0 %1383
          %v1386 = vmul.f32 %v1157, %v1384
          %1388 = vrot.lane.b32.xlu0 %v1386, 126
          %v1389 = vpop.permute.xlu0 %1388
          %v1391 = vadd.f32 %v1367, %v1389
          %v1393 = vlaneseq
          %v1394 = vshrl.u32 %v1393, 7
          %v1395 = vsub.s32 0, %v1394
          %v1396 = vrot.slane %v1391, %v1395
          %1397 = vrot.lane.b32.xlu0 %v1396, 3
          %v1398 = vpop.permute.xlu0 %1397
          %1400 = vst.msk [vmem:[#allocation4 + $0x1] sm:$0x1] %vm1353, %v1398
          %v1402 = vlaneseq
          %v1403 = vshrl.u32 %v1402, 7
          %v1404 = vsub.s32 0, %v1403
          %v1405 = vrot.slane %v1246, %v1404
          %1406 = vrot.lane.b32.xlu0 %v1405, 126
          %v1407 = vpop.permute.xlu0 %1406
          %1409 = vst.msk [vmem:[#allocation4 + $0x2] sm:$0x1] %vm1275, %v1407
          %v1411 = vlaneseq
          %v1412 = vshrl.u32 %v1411, 7
          %v1413 = vsub.s32 0, %v1412
          %v1414 = vrot.slane %v1253, %v1413
          %1415 = vrot.lane.b32.xlu0 %v1414, 1
          %v1416 = vpop.permute.xlu0 %1415
          %1418 = vst.msk [vmem:[#allocation4 + $0x2] sm:$0x1] %vm1285, %v1416
          %v1420 = vlaneseq
          %v1421 = vshrl.u32 %v1420, 7
          %v1422 = vsub.s32 0, %v1421
          %v1423 = vrot.slane %v1263, %v1422
          %1424 = vrot.lane.b32.xlu0 %v1423, 1
          %v1425 = vpop.permute.xlu0 %1424
          %1427 = vst.msk [vmem:[#allocation4 + $0x2] sm:$0x1] %vm304, %v1425
          %1428 = vrot.lane.b32.xlu0 %v1310, 2
          %v1429 = vpop.permute.xlu0 %1428
          %v1431 = vmul.f32 %v1246, %v1429
          %v1432 = vmul.f32 %v1253, %v1265
          %1434 = vrot.lane.b32.xlu0 %v1432, 2
          %v1435 = vpop.permute.xlu0 %1434
          %v1437 = vadd.f32 %v1431, %v1435
          %1438 = vrot.lane.b32.xlu0 %v1382, 1
          %v1439 = vpop.permute.xlu0 %1438
          %v1441 = vmul.f32 %v1263, %v1439
          %1443 = vrot.lane.b32.xlu0 %v1441, 1
          %v1444 = vpop.permute.xlu0 %1443
          %v1446 = vadd.f32 %v1437, %v1444
          %v1448 = vlaneseq
          %v1449 = vshrl.u32 %v1448, 7
          %v1450 = vsub.s32 0, %v1449
          %v1451 = vrot.slane %v1446, %v1450
          %1452 = vrot.lane.b32.xlu0 %v1451, 1
          %v1453 = vpop.permute.xlu0 %1452
          %1455 = vst.msk [vmem:[#allocation4 + $0x2] sm:$0x1] %vm1353, %v1453
        $region44: #{_forward_impl.1} parent=35 // pred_fallthru
          _
      $region36: #{_forward_impl.1} parent=31 // pred_fallthru
        _
      %p1456 = scmp.eq.s32.totalorder %s18, 1
      // Predicated region
      $region45: #{_forward_impl.1} parent=31 // pred_check
        %p1457 = pneg %p1456
      $region46: #{_forward_impl.1} parent=31 // pred_check_branch
        %1459 = sbr.rel (%p1457) target = $region48
      $region47: #{_forward_impl.1} parent=31 // pred_region
        %v1460 = vld [vmem:[%s181] sm:$0x77]
        %v1461 = vld [vmem:[#allocation4] sm:$0x7]
        %1463 = vset.pattern.permute.xlu0 0
        %1464 = vperm.xlu0 %1463, %v1461
        %v1465 = vpop.permute.xlu0 %1464
        %v1468 = vlaneseq
        %v1469 = vshrl.u32 %v1468, 7
        %v1470 = vsub.s32 0, %v1469
        %v1471 = vrot.slane %v1460, %v1470
        %v1472 = vlaneseq
        %v1473 = vshrl.u32 %v1472, 7
        %v1474 = vsub.s32 4, %v1473
        %v1475 = vrot.slane %v1460, %v1474
        %v1478 = vlaneseq
        %v1479 = vshrl.u32 %v1478, 7
        %v1480 = vsub.s32 0, %v1479
        %v1481 = vrot.slane %v1471, %v1480
        %v1482 = vlaneseq
        %v1483 = vshrl.u32 %v1482, 7
        %v1484 = vsub.s32 0, %v1483
        %v1485 = vrot.slane %v1475, %v1484
        %v1486 = vmul.f32 %v1465, %v1481
        %v1487 = vmul.f32 %v1465, %v1485
        %1488 = vset.pattern.permute.xlu0 1
        %1489 = vperm.xlu0 %1488, %v1461
        %v1490 = vpop.permute.xlu0 %1489
        %v1492 = vlaneseq
        %v1493 = vshrl.u32 %v1492, 7
        %v1494 = vsub.s32 1, %v1493
        %v1495 = vrot.slane %v1460, %v1494
        %v1496 = vlaneseq
        %v1497 = vshrl.u32 %v1496, 7
        %v1498 = vsub.s32 5, %v1497
        %v1499 = vrot.slane %v1460, %v1498
        %v1502 = vlaneseq
        %v1503 = vshrl.u32 %v1502, 7
        %v1504 = vsub.s32 1, %v1503
        %v1505 = vrot.slane %v1495, %v1504
        %v1506 = vlaneseq
        %v1507 = vshrl.u32 %v1506, 7
        %v1508 = vsub.s32 1, %v1507
        %v1509 = vrot.slane %v1499, %v1508
        %v1510 = vmul.f32 %v1490, %v1505
        %v1511 = vmul.f32 %v1490, %v1509
        %v1512 = vadd.f32 %v1486, %v1510
        %v1513 = vadd.f32 %v1487, %v1511
        %1514 = vset.pattern.permute.xlu0 2
        %1515 = vperm.xlu0 %1514, %v1461
        %v1516 = vpop.permute.xlu0 %1515
        %v1518 = vlaneseq
        %v1519 = vshrl.u32 %v1518, 7
        %v1520 = vsub.s32 2, %v1519
        %v1521 = vrot.slane %v1460, %v1520
        %v1522 = vlaneseq
        %v1523 = vshrl.u32 %v1522, 7
        %v1524 = vsub.s32 6, %v1523
        %v1525 = vrot.slane %v1460, %v1524
        %v1528 = vlaneseq
        %v1529 = vshrl.u32 %v1528, 7
        %v1530 = vsub.s32 2, %v1529
        %v1531 = vrot.slane %v1521, %v1530
        %v1532 = vlaneseq
        %v1533 = vshrl.u32 %v1532, 7
        %v1534 = vsub.s32 2, %v1533
        %v1535 = vrot.slane %v1525, %v1534
        %v1536 = vmul.f32 %v1516, %v1531
        %v1537 = vmul.f32 %v1516, %v1535
        %v1538 = vadd.f32 %v1512, %v1536
        %v1539 = vadd.f32 %v1513, %v1537
        %1540 = vset.pattern.permute.xlu0 3
        %1541 = vperm.xlu0 %1540, %v1461
        %v1542 = vpop.permute.xlu0 %1541
        %v1544 = vsub.f32 %v1538, %v1542
        %v1545 = vsub.f32 %v1539, %v1542
        %v1548 = vcombine.low %v1544, %v1545
        %1550 = vst [vmem:[%s188] sm:$0x77] %v1548
      $region48: #{_forward_impl.1} parent=31 // pred_fallthru
        _
      %s1551 = smul.u32 %s19, %s18
      %s1552 = smul.u32 2, %s1551
      %p1553 = scmp.lt.s32.totalorder %s1552, 1
      %s1554 = scalar_select %p1553, %s1552, 1
      %s1555 = smul.addr %s1554, 4
      %s1556 = scalar_lea.vmem %s3, %s1555
      // Predicated region
      $region49: #{_forward_impl.1} parent=31 // pred_check
        %p1557 = pneg %p114
      $region50: #{_forward_impl.1} parent=31 // pred_check_branch
        %1559 = sbr.rel (%p1557) target = $region52
      $region51: #{_forward_impl.1} parent=31 // pred_region
        %s1560 = smul.u32 %s19, %s18
        %s1561 = smul.u32 2, %s1560
      $region52: #{_forward_impl.1} parent=31 // pred_fallthru
        _
    $region32: #{_forward_impl.1} parent=5 // pred_fallthru
      _
    %p1562 = scmp.le.s32.totalorder 2, %s9
    // Predicated region
    $region53: #{_forward_impl.1} parent=5 // pred_check
      %p1563 = pneg %p1562
    $region54: #{_forward_impl.1} parent=5 // pred_check_branch
      %1565 = sbr.rel (%p1563) target = $region56
    $region55: #{_forward_impl.1} parent=5 // pred_region
      %s1566 = ssub.s32 %s9, 2
      // Predicated region
      $region57: #{_forward_impl.1} parent=55 // pred_check
        %p1567 = pneg %p120
      $region58: #{_forward_impl.1} parent=55 // pred_check_branch
        %1569 = sbr.rel (%p1567) target = $region60
      $region59: #{_forward_impl.1} parent=55 // pred_region
        %s1570 = smul.u32 %s21, %s20
        %s1571 = smul.u32 2, %s1570
        %p1572 = scmp.lt.s32.totalorder %s1571, 1
        %s1573 = scalar_select %p1572, %s1571, 1
        %s1574 = smul.addr %s1573, 4
        %s1575 = scalar_lea.vmem %s3, %s1574
      $region60: #{_forward_impl.1} parent=55 // pred_fallthru
        _
    $region56: #{_forward_impl.1} parent=5 // pred_fallthru
      _
  $region6: #{_forward_impl.1} parent=0 // loop_footer
    %s13 = sadd.s32 1, %s9
  $region7: #{_forward_impl.1} parent=0 // loop_footer_branch
    %8 = sbr.rel target = $region3
  $region8: #{_forward_impl.1} parent=0 // loop_exit
    _

</llo_original>
